<compile_context>
chip_gen: v6e
topology: v6e:2x2x1
jax: 0.10.0
libtpu: 0.0.40
codegen_flags: <defaults>
</compile_context>

<pallas_src>
import functools

import jax
import jax.numpy as jnp
import numpy as np
from jax import lax
from jax.experimental import pallas as pl
from jax.experimental.pallas import tpu as pltpu

BN_EPS = 1e-5
NEG_SLOPE = 0.01
_LANE = 128


def _round_up(x, m):
    return (x + m - 1) // m * m


def _cdiv(a, b):
    return -(-a // b)


def _vmem_budget_and_limit():
    """Chip-aware per-call working-set target and scoped-VMEM limit (bytes)."""
    cap = 64 * 2**20                       # conservative default = v7x per-TC VMEM
    try:
        cap = int(getattr(pltpu.get_tpu_info(), "vmem_capacity_bytes", cap))
    except Exception:
        pass
    if cap >= 100 * 2**20:                 # v5e / v6e: 128 MiB physical VMEM
        return 56 * 2**20, 96 * 2**20
    return 26 * 2**20, 44 * 2**20          # v7x (64 MiB per TensorCore): leave headroom


def _pick_tile_rows(ho, wp1, k4, c_pad, budget):
    """Largest output-row count per tile whose pass-1/2 working set fits the budget."""
    # per output row: z slab (bf16, 2 bufs) + out (f32, 2 bufs) + f32 acc temp
    #                 + lane-padded (MT,1) bf16 mask tile (2 bufs)
    per_row = wp1 * (2 * 2 * k4 + (2 + 2) * 4 * c_pad + 2 * 256)
    fixed = 2 * 2 * 2 * wp1 * k4           # 2-row z halo, double-buffered, bf16
    fixed += 4 * k4 * c_pad * 2            # resident shifted-tap weights (constant index)
    th = (budget - fixed) // per_row
    return int(max(1, min(ho, th)))


# ------------------------------ Pallas kernels ------------------------------


def _conv_tile(z_ref, w_ref, *, mt, wp1):
    """f32 (MT, C_pad) conv output of one tile: 4 shifted bf16 matmuls over the
    flattened space-to-depth slab (shift offsets 0, 1, Wp1, Wp1+1 in slab rows)."""
    offs = (0, 1, wp1, wp1 + 1)
    acc = jnp.dot(z_ref[0, 0:mt, :], w_ref[0], preferred_element_type=jnp.float32)
    for s in range(1, 4):
        acc = acc + jnp.dot(z_ref[0, offs[s]:offs[s] + mt, :], w_ref[s],
                            preferred_element_type=jnp.float32)
    return acc


def _conv_stats_kernel(z_ref, w_ref, mask_ref, stats_ref, *, th, wp1):
    """Pass 1: per-tile conv -> per-channel sum / sum-of-squares (BN batch stats)."""
    mt = th * wp1
    y = _conv_tile(z_ref, w_ref, mt=mt, wp1=wp1)
    ym = y * mask_ref[0]                           # zero dummy-column / padded rows
    stats_ref[0, 0:1, :] = jnp.sum(ym, axis=0, keepdims=True)
    stats_ref[0, 1:2, :] = jnp.sum(ym * y, axis=0, keepdims=True)


def _conv_bn_lrelu_kernel(z_ref, w_ref, ss_ref, o_ref, *, th, wp1):
    """Pass 2: recompute the conv tile, apply BN scale/shift, LeakyReLU, store."""
    mt = th * wp1
    y = _conv_tile(z_ref, w_ref, mt=mt, wp1=wp1)
    v = y * ss_ref[0:1, :] + ss_ref[1:2, :]
    o_ref[0, :, :] = jnp.where(v >= 0, v, NEG_SLOPE * v)


# ------------------------------ wrapper / glue -------------------------------


@jax.jit
def down_conv_forward(x_nchw, conv_w, conv_b, bn_gamma, bn_beta):
    """x: (N, Cin, H, W) f32; conv_w: (Cout, Cin, 3, 3). Returns (N, Cout, Ho, Wo) f32.
    conv_b is accepted for API parity but never loaded: a per-channel constant added
    before train-mode BatchNorm cancels exactly."""
    N, Cin, H, W = x_nchw.shape
    Cout = conv_w.shape[0]
    Ho = (H - 1) // 2 + 1
    Wo = (W - 1) // 2 + 1
    Wp1 = Wo + 1                       # +1 dummy output column keeps tap offsets constant
    K4 = 4 * Cin                       # contraction width per shifted matmul
    C_pad = _round_up(Cout, _LANE)     # lane-dense output channels

    budget, vmem_limit = _vmem_budget_and_limit()
    TH = _pick_tile_rows(Ho, Wp1, K4, C_pad, budget)
    nT = _cdiv(Ho, TH)
    if N * nT < 2 or (N * nT) % 2 == 1:
        nT += 1                        # even tile count -> both v7x TensorCores busy
        TH = _cdiv(Ho, nT)
    num_tiles = N * nT
    MT = TH * Wp1                      # output rows per tile (incl. dummy column)
    MT_in = (TH + 2) * Wp1             # slab rows per tile (2 z-rows of halo)

    # ---- bf16 space-to-depth prep (pure copy-like XLA ops; no f32 im2col) ----
    xb = x_nchw.astype(jnp.bfloat16)
    x_nhwc = jnp.transpose(xb, (0, 2, 3, 1))
    Hp2, Wp2 = 2 * (Ho + 1), 2 * (Wo + 1)
    x_p = jnp.pad(x_nhwc, ((0, 0), (1, Hp2 - H - 1), (1, Wp2 - W - 1), (0, 0)))
    z = x_p.reshape(N, Ho + 1, 2, Wo + 1, 2, Cin)
    z = jnp.transpose(z, (0, 1, 3, 2, 4, 5)).reshape(N, Ho + 1, Wp1, K4)  # lanes=(p,q,ci)
    R = nT * TH + 2
    z = jnp.pad(z, ((0, 0), (0, R - (Ho + 1)), (0, 0), (0, 0)))
    row_idx = jnp.arange(nT)[:, None] * TH + jnp.arange(TH + 2)[None, :]  # halo'd rows
    z_tiles = z[:, row_idx].reshape(num_tiles, MT_in, K4)                 # bf16

    # ---- shifted-tap weights: W[dr*2+dc][(p,q,ci), co]; taps outside 3x3 are 0 ----
    w_t = jnp.transpose(conv_w.astype(jnp.float32), (2, 3, 1, 0))         # (kh,kw,ci,co)
    w_shift = jnp.zeros((2, 2, 2, 2, Cin, Cout), jnp.float32)             # (dr,dc,p,q,ci,co)
    for kh in range(3):
        for kw in range(3):
            w_shift = w_shift.at[kh // 2, kw // 2, kh % 2, kw % 2].set(w_t[kh, kw])
    w_shift = w_shift.reshape(4, K4, Cout)
    w_shift = jnp.pad(w_shift, ((0, 0), (0, 0), (0, C_pad - Cout))).astype(jnp.bfloat16)

    # ---- per-tile validity mask over the (TH, Wp1) padded output grid ----
    r_idx = jnp.arange(TH)[None, :, None]
    c_idx = jnp.arange(Wp1)[None, None, :]
    t_idx = jnp.arange(nT)[:, None, None]
    valid = (c_idx < Wo) & (t_idx * TH + r_idx < Ho)                      # (nT, TH, Wp1)
    mask = jnp.tile(valid.reshape(nT, MT, 1), (N, 1, 1)).astype(jnp.bfloat16)

    cparams = pltpu.CompilerParams(dimension_semantics=("parallel",),
                                   vmem_limit_bytes=vmem_limit)

    # ---- pass 1: fused conv -> per-tile BN statistics (no y written to HBM) ----
    tile_stats = pl.pallas_call(
        functools.partial(_conv_stats_kernel, th=TH, wp1=Wp1),
        grid=(num_tiles,),
        in_specs=[
            pl.BlockSpec((1, MT_in, K4), lambda i: (i, 0, 0)),
            pl.BlockSpec((4, K4, C_pad), lambda i: (0, 0, 0)),
            pl.BlockSpec((1, MT, 1), lambda i: (i, 0, 0)),
        ],
        out_specs=pl.BlockSpec((1, 2, C_pad), lambda i: (i, 0, 0)),
        out_shape=jax.ShapeDtypeStruct((num_tiles, 2, C_pad), jnp.float32),
        compiler_params=cparams,
    )(z_tiles, w_shift, mask)

    # ---- tiny per-channel BN finalize (training-mode, biased variance) ----
    m_valid = N * Ho * Wo
    sums = jnp.sum(tile_stats, axis=0)                                    # (2, C_pad)
    mean = sums[0] / m_valid
    # NOTE: E[y^2]-E[y]^2 in f32; fine at activation scale, less robust than a
    # centered pass if per-channel |mean| >> std.
    var = jnp.maximum(sums[1] / m_valid - mean * mean, 0.0)
    inv_std = lax.rsqrt(var + BN_EPS)
    gamma = jnp.pad(bn_gamma.astype(jnp.float32), (0, C_pad - Cout))
    beta = jnp.pad(bn_beta.astype(jnp.float32), (0, C_pad - Cout))
    scale = gamma * inv_std
    shift = beta - mean * scale
    scale_shift = jnp.stack([scale, shift], axis=0)                       # (2, C_pad)

    # ---- pass 2: recompute conv tile, normalize, LeakyReLU, lane-dense store ----
    out_tiles = pl.pallas_call(
        functools.partial(_conv_bn_lrelu_kernel, th=TH, wp1=Wp1),
        grid=(num_tiles,),
        in_specs=[
            pl.BlockSpec((1, MT_in, K4), lambda i: (i, 0, 0)),
            pl.BlockSpec((4, K4, C_pad), lambda i: (0, 0, 0)),
            pl.BlockSpec((2, C_pad), lambda i: (0, 0)),
        ],
        out_specs=pl.BlockSpec((1, MT, C_pad), lambda i: (i, 0, 0)),
        out_shape=jax.ShapeDtypeStruct((num_tiles, MT, C_pad), jnp.float32),
        compiler_params=cparams,
    )(z_tiles, w_shift, scale_shift)

    out = out_tiles.reshape(N, nT * TH, Wp1, C_pad)[:, :Ho, :Wo, :Cout]
    # TODO(synk): keep the model NHWC end-to-end to drop this HBM transpose.
    return jnp.transpose(out, (0, 3, 1, 2))


def _reference_forward(x_nchw, conv_w, conv_b, bn_gamma, bn_beta):
    """Pure-JAX reference matching PyTorch down_conv in training mode."""
    y = lax.conv_general_dilated(
        x_nchw.astype(jnp.float32), conv_w.astype(jnp.float32),
        window_strides=(2, 2), padding=((1, 1), (1, 1)),
        dimension_numbers=("NCHW", "OIHW", "NCHW"))
    y = y + conv_b.reshape(1, -1, 1, 1)
    mean = jnp.mean(y, axis=(0, 2, 3), keepdims=True)
    var = jnp.mean((y - mean) ** 2, axis=(0, 2, 3), keepdims=True)
    y_hat = (y - mean) * lax.rsqrt(var + BN_EPS)
    v = bn_gamma.reshape(1, -1, 1, 1) * y_hat + bn_beta.reshape(1, -1, 1, 1)
    return jnp.where(v >= 0, v, NEG_SLOPE * v)


if __name__ == "__main__":
    key = jax.random.PRNGKey(0)
    k_x, k_w, k_b, k_g, k_beta = jax.random.split(key, 5)

    N, Cin, Cout, H, W = 2, 4, 8, 16, 16
    x = jax.random.normal(k_x, (N, Cin, H, W), dtype=jnp.float32)

    # Parameter shapes match nn.Conv2d(Cin, Cout, 3) + nn.BatchNorm2d(Cout).
    fan_in = Cin * 3 * 3
    bound = 1.0 / np.sqrt(fan_in)
    conv_w = jax.random.uniform(k_w, (Cout, Cin, 3, 3), jnp.float32, -bound, bound)
    conv_b = jax.random.uniform(k_b, (Cout,), jnp.float32, -bound, bound)
    bn_gamma = 1.0 + 0.1 * jax.random.normal(k_g, (Cout,), jnp.float32)
    bn_beta = 0.1 * jax.random.normal(k_beta, (Cout,), jnp.float32)

    out = jax.block_until_ready(down_conv_forward(x, conv_w, conv_b, bn_gamma, bn_beta))
    assert out.shape == (N, Cout, H // 2, W // 2)

    # Tight check: reference fed the same bf16-rounded conv inputs (isolates kernel
    # math from the deliberate bf16 MXU feed).
    x16 = x.astype(jnp.bfloat16).astype(jnp.float32)
    w16 = conv_w.astype(jnp.bfloat16).astype(jnp.float32)
    ref16 = jax.block_until_ready(_reference_forward(x16, w16, conv_b, bn_gamma, bn_beta))
    np.testing.assert_allclose(np.asarray(out), np.asarray(ref16), atol=2e-3, rtol=2e-3)

    # Loose check against the full-f32 reference (bf16 MXU inputs -> relaxed tolerance).
    ref = jax.block_until_ready(_reference_forward(x, conv_w, conv_b, bn_gamma, bn_beta))
    np.testing.assert_allclose(np.asarray(out), np.asarray(ref), atol=6e-2, rtol=6e-2)

    print("KERNEL_OK")
</pallas_src>

<mosaic_0001>
module attributes {stable_mosaic.version = 11 : i64} {
  func.func @_conv_stats_kernel(%arg0: i32, %arg1: memref<1x90x16xbf16, #tpu.memory_space<vmem>>, %arg2: memref<4x16x128xbf16, #tpu.memory_space<vmem>>, %arg3: memref<1x72x1xbf16, #tpu.memory_space<vmem>>, %arg4: memref<1x2x128xf32, #tpu.memory_space<vmem>>) attributes {dimension_semantics = [#tpu.dimension_semantics<parallel>], iteration_bounds = array<i64: 2>, scalar_prefetch = 0 : i64, scratch_operands = 0 : i64, tpu.core_type = #tpu.core_type<tc>, window_params = [{transform_indices = @transform_0, window_bounds = array<i64: 1, 90, 16>}, {pipeline_mode = #tpu.pipeline_mode<synchronous>, transform_indices = @transform_1, window_bounds = array<i64: 4, 16, 128>}, {transform_indices = @transform_2, window_bounds = array<i64: 1, 72, 1>}, {transform_indices = @transform_3, window_bounds = array<i64: 1, 2, 128>}]} {
    %c0 = arith.constant 0 : index
    %c0_0 = arith.constant 0 : index
    %c0_1 = arith.constant 0 : index
    %0 = vector.load %arg1[%c0, %c0_0, %c0_1] : memref<1x90x16xbf16, #tpu.memory_space<vmem>>, vector<1x72x16xbf16>
    %1 = vector.shape_cast %0 : vector<1x72x16xbf16> to vector<72x16xbf16>
    %c0_2 = arith.constant 0 : index
    %c0_3 = arith.constant 0 : index
    %c0_4 = arith.constant 0 : index
    %2 = vector.load %arg2[%c0_2, %c0_3, %c0_4] : memref<4x16x128xbf16, #tpu.memory_space<vmem>>, vector<1x16x128xbf16>
    %3 = vector.shape_cast %2 : vector<1x16x128xbf16> to vector<16x128xbf16>
    %cst = arith.constant dense<0.000000e+00> : vector<72x128xf32>
    %4 = tpu.matmul %1, %3, %cst {dimension_numbers = #tpu.dot_dimension_numbers<[1], [0], [0], [1], [0, 0, 1, 1], [], []>} : vector<72x16xbf16>, vector<16x128xbf16>, vector<72x128xf32> -> vector<72x128xf32>
    %c0_5 = arith.constant 0 : index
    %c1 = arith.constant 1 : index
    %c0_6 = arith.constant 0 : index
    %5 = vector.load %arg1[%c0_5, %c1, %c0_6] : memref<1x90x16xbf16, #tpu.memory_space<vmem>>, vector<1x72x16xbf16>
    %6 = vector.shape_cast %5 : vector<1x72x16xbf16> to vector<72x16xbf16>
    %c1_7 = arith.constant 1 : index
    %c0_8 = arith.constant 0 : index
    %c0_9 = arith.constant 0 : index
    %7 = vector.load %arg2[%c1_7, %c0_8, %c0_9] : memref<4x16x128xbf16, #tpu.memory_space<vmem>>, vector<1x16x128xbf16>
    %8 = vector.shape_cast %7 : vector<1x16x128xbf16> to vector<16x128xbf16>
    %cst_10 = arith.constant dense<0.000000e+00> : vector<72x128xf32>
    %9 = tpu.matmul %6, %8, %cst_10 {dimension_numbers = #tpu.dot_dimension_numbers<[1], [0], [0], [1], [0, 0, 1, 1], [], []>} : vector<72x16xbf16>, vector<16x128xbf16>, vector<72x128xf32> -> vector<72x128xf32>
    %10 = arith.addf %4, %9 : vector<72x128xf32>
    %c0_11 = arith.constant 0 : index
    %c9 = arith.constant 9 : index
    %c0_12 = arith.constant 0 : index
    %11 = vector.load %arg1[%c0_11, %c9, %c0_12] : memref<1x90x16xbf16, #tpu.memory_space<vmem>>, vector<1x72x16xbf16>
    %12 = vector.shape_cast %11 : vector<1x72x16xbf16> to vector<72x16xbf16>
    %c2 = arith.constant 2 : index
    %c0_13 = arith.constant 0 : index
    %c0_14 = arith.constant 0 : index
    %13 = vector.load %arg2[%c2, %c0_13, %c0_14] : memref<4x16x128xbf16, #tpu.memory_space<vmem>>, vector<1x16x128xbf16>
    %14 = vector.shape_cast %13 : vector<1x16x128xbf16> to vector<16x128xbf16>
    %cst_15 = arith.constant dense<0.000000e+00> : vector<72x128xf32>
    %15 = tpu.matmul %12, %14, %cst_15 {dimension_numbers = #tpu.dot_dimension_numbers<[1], [0], [0], [1], [0, 0, 1, 1], [], []>} : vector<72x16xbf16>, vector<16x128xbf16>, vector<72x128xf32> -> vector<72x128xf32>
    %16 = arith.addf %10, %15 : vector<72x128xf32>
    %c0_16 = arith.constant 0 : index
    %c10 = arith.constant 10 : index
    %c0_17 = arith.constant 0 : index
    %17 = vector.load %arg1[%c0_16, %c10, %c0_17] : memref<1x90x16xbf16, #tpu.memory_space<vmem>>, vector<1x72x16xbf16>
    %18 = vector.shape_cast %17 : vector<1x72x16xbf16> to vector<72x16xbf16>
    %c3 = arith.constant 3 : index
    %c0_18 = arith.constant 0 : index
    %c0_19 = arith.constant 0 : index
    %19 = vector.load %arg2[%c3, %c0_18, %c0_19] : memref<4x16x128xbf16, #tpu.memory_space<vmem>>, vector<1x16x128xbf16>
    %20 = vector.shape_cast %19 : vector<1x16x128xbf16> to vector<16x128xbf16>
    %cst_20 = arith.constant dense<0.000000e+00> : vector<72x128xf32>
    %21 = tpu.matmul %18, %20, %cst_20 {dimension_numbers = #tpu.dot_dimension_numbers<[1], [0], [0], [1], [0, 0, 1, 1], [], []>} : vector<72x16xbf16>, vector<16x128xbf16>, vector<72x128xf32> -> vector<72x128xf32>
    %22 = arith.addf %16, %21 : vector<72x128xf32>
    %c0_21 = arith.constant 0 : index
    %c0_22 = arith.constant 0 : index
    %c0_23 = arith.constant 0 : index
    %23 = vector.load %arg3[%c0_21, %c0_22, %c0_23] : memref<1x72x1xbf16, #tpu.memory_space<vmem>>, vector<1x72x1xbf16>
    %24 = vector.shape_cast %23 : vector<1x72x1xbf16> to vector<72x1xbf16>
    %25 = arith.extf %24 : vector<72x1xbf16> to vector<72x1xf32>
    %26 = vector.broadcast %25 : vector<72x1xf32> to vector<72x128xf32>
    %27 = arith.mulf %22, %26 : vector<72x128xf32>
    %cst_24 = arith.constant dense<0.000000e+00> : vector<128xf32>
    %28 = vector.multi_reduction <add>, %27, %cst_24 [0] : vector<72x128xf32> to vector<128xf32>
    %29 = vector.shape_cast %28 : vector<128xf32> to vector<1x128xf32>
    %c0_25 = arith.constant 0 : index
    %c0_26 = arith.constant 0 : index
    %c0_27 = arith.constant 0 : index
    %30 = vector.load %arg4[%c0_25, %c0_26, %c0_27] : memref<1x2x128xf32, #tpu.memory_space<vmem>>, vector<1x1x128xf32>
    %31 = vector.shape_cast %30 : vector<1x1x128xf32> to vector<1x128xf32>
    %32 = vector.shape_cast %29 : vector<1x128xf32> to vector<1x1x128xf32>
    tpu.vector_store %arg4[%c0_25, %c0_26, %c0_27], %32 {strides = array<i32>} : memref<1x2x128xf32, #tpu.memory_space<vmem>>, vector<1x1x128xf32>,
    %33 = arith.mulf %27, %22 : vector<72x128xf32>
    %cst_28 = arith.constant dense<0.000000e+00> : vector<128xf32>
    %34 = vector.multi_reduction <add>, %33, %cst_28 [0] : vector<72x128xf32> to vector<128xf32>
    %35 = vector.shape_cast %34 : vector<128xf32> to vector<1x128xf32>
    %c0_29 = arith.constant 0 : index
    %c1_30 = arith.constant 1 : index
    %c0_31 = arith.constant 0 : index
    %36 = vector.load %arg4[%c0_29, %c1_30, %c0_31] : memref<1x2x128xf32, #tpu.memory_space<vmem>>, vector<1x1x128xf32>
    %37 = vector.shape_cast %36 : vector<1x1x128xf32> to vector<1x128xf32>
    %38 = vector.shape_cast %35 : vector<1x128xf32> to vector<1x1x128xf32>
    tpu.vector_store %arg4[%c0_29, %c1_30, %c0_31], %38 {strides = array<i32>} : memref<1x2x128xf32, #tpu.memory_space<vmem>>, vector<1x1x128xf32>,
    return
  }
  func.func @transform_0(%arg0: i32) -> (i32, i32, i32) {
    %c0_i32 = arith.constant 0 : i32
    %c0_i32_0 = arith.constant 0 : i32
    %c0_i32_1 = arith.constant 0 : i32
    return %arg0, %c0_i32, %c0_i32_0 : i32, i32, i32
  }
  func.func @transform_1(%arg0: i32) -> (i32, i32, i32) {
    %c0_i32 = arith.constant 0 : i32
    %c0_i32_0 = arith.constant 0 : i32
    %c0_i32_1 = arith.constant 0 : i32
    %c0_i32_2 = arith.constant 0 : i32
    return %c0_i32, %c0_i32_0, %c0_i32_1 : i32, i32, i32
  }
  func.func @transform_2(%arg0: i32) -> (i32, i32, i32) {
    %c0_i32 = arith.constant 0 : i32
    %c0_i32_0 = arith.constant 0 : i32
    %c0_i32_1 = arith.constant 0 : i32
    return %arg0, %c0_i32, %c0_i32_0 : i32, i32, i32
  }
  func.func @transform_3(%arg0: i32) -> (i32, i32, i32) {
    %c0_i32 = arith.constant 0 : i32
    %c0_i32_0 = arith.constant 0 : i32
    %c0_i32_1 = arith.constant 0 : i32
    return %arg0, %c0_i32, %c0_i32_0 : i32, i32, i32
  }
}

module attributes {stable_mosaic.version = 11 : i64} {
  func.func @_conv_bn_lrelu_kernel(%arg0: i32, %arg1: memref<1x90x16xbf16, #tpu.memory_space<vmem>>, %arg2: memref<4x16x128xbf16, #tpu.memory_space<vmem>>, %arg3: memref<2x128xf32, #tpu.memory_space<vmem>>, %arg4: memref<1x72x128xf32, #tpu.memory_space<vmem>>) attributes {dimension_semantics = [#tpu.dimension_semantics<parallel>], iteration_bounds = array<i64: 2>, scalar_prefetch = 0 : i64, scratch_operands = 0 : i64, tpu.core_type = #tpu.core_type<tc>, window_params = [{transform_indices = @transform_0, window_bounds = array<i64: 1, 90, 16>}, {pipeline_mode = #tpu.pipeline_mode<synchronous>, transform_indices = @transform_1, window_bounds = array<i64: 4, 16, 128>}, {pipeline_mode = #tpu.pipeline_mode<synchronous>, transform_indices = @transform_2, window_bounds = array<i64: 2, 128>}, {transform_indices = @transform_3, window_bounds = array<i64: 1, 72, 128>}]} {
    %c0 = arith.constant 0 : index
    %c0_0 = arith.constant 0 : index
    %c0_1 = arith.constant 0 : index
    %0 = vector.load %arg1[%c0, %c0_0, %c0_1] : memref<1x90x16xbf16, #tpu.memory_space<vmem>>, vector<1x72x16xbf16>
    %1 = vector.shape_cast %0 : vector<1x72x16xbf16> to vector<72x16xbf16>
    %c0_2 = arith.constant 0 : index
    %c0_3 = arith.constant 0 : index
    %c0_4 = arith.constant 0 : index
    %2 = vector.load %arg2[%c0_2, %c0_3, %c0_4] : memref<4x16x128xbf16, #tpu.memory_space<vmem>>, vector<1x16x128xbf16>
    %3 = vector.shape_cast %2 : vector<1x16x128xbf16> to vector<16x128xbf16>
    %cst = arith.constant dense<0.000000e+00> : vector<72x128xf32>
    %4 = tpu.matmul %1, %3, %cst {dimension_numbers = #tpu.dot_dimension_numbers<[1], [0], [0], [1], [0, 0, 1, 1], [], []>} : vector<72x16xbf16>, vector<16x128xbf16>, vector<72x128xf32> -> vector<72x128xf32>
    %c0_5 = arith.constant 0 : index
    %c1 = arith.constant 1 : index
    %c0_6 = arith.constant 0 : index
    %5 = vector.load %arg1[%c0_5, %c1, %c0_6] : memref<1x90x16xbf16, #tpu.memory_space<vmem>>, vector<1x72x16xbf16>
    %6 = vector.shape_cast %5 : vector<1x72x16xbf16> to vector<72x16xbf16>
    %c1_7 = arith.constant 1 : index
    %c0_8 = arith.constant 0 : index
    %c0_9 = arith.constant 0 : index
    %7 = vector.load %arg2[%c1_7, %c0_8, %c0_9] : memref<4x16x128xbf16, #tpu.memory_space<vmem>>, vector<1x16x128xbf16>
    %8 = vector.shape_cast %7 : vector<1x16x128xbf16> to vector<16x128xbf16>
    %cst_10 = arith.constant dense<0.000000e+00> : vector<72x128xf32>
    %9 = tpu.matmul %6, %8, %cst_10 {dimension_numbers = #tpu.dot_dimension_numbers<[1], [0], [0], [1], [0, 0, 1, 1], [], []>} : vector<72x16xbf16>, vector<16x128xbf16>, vector<72x128xf32> -> vector<72x128xf32>
    %10 = arith.addf %4, %9 : vector<72x128xf32>
    %c0_11 = arith.constant 0 : index
    %c9 = arith.constant 9 : index
    %c0_12 = arith.constant 0 : index
    %11 = vector.load %arg1[%c0_11, %c9, %c0_12] : memref<1x90x16xbf16, #tpu.memory_space<vmem>>, vector<1x72x16xbf16>
    %12 = vector.shape_cast %11 : vector<1x72x16xbf16> to vector<72x16xbf16>
    %c2 = arith.constant 2 : index
    %c0_13 = arith.constant 0 : index
    %c0_14 = arith.constant 0 : index
    %13 = vector.load %arg2[%c2, %c0_13, %c0_14] : memref<4x16x128xbf16, #tpu.memory_space<vmem>>, vector<1x16x128xbf16>
    %14 = vector.shape_cast %13 : vector<1x16x128xbf16> to vector<16x128xbf16>
    %cst_15 = arith.constant dense<0.000000e+00> : vector<72x128xf32>
    %15 = tpu.matmul %12, %14, %cst_15 {dimension_numbers = #tpu.dot_dimension_numbers<[1], [0], [0], [1], [0, 0, 1, 1], [], []>} : vector<72x16xbf16>, vector<16x128xbf16>, vector<72x128xf32> -> vector<72x128xf32>
    %16 = arith.addf %10, %15 : vector<72x128xf32>
    %c0_16 = arith.constant 0 : index
    %c10 = arith.constant 10 : index
    %c0_17 = arith.constant 0 : index
    %17 = vector.load %arg1[%c0_16, %c10, %c0_17] : memref<1x90x16xbf16, #tpu.memory_space<vmem>>, vector<1x72x16xbf16>
    %18 = vector.shape_cast %17 : vector<1x72x16xbf16> to vector<72x16xbf16>
    %c3 = arith.constant 3 : index
    %c0_18 = arith.constant 0 : index
    %c0_19 = arith.constant 0 : index
    %19 = vector.load %arg2[%c3, %c0_18, %c0_19] : memref<4x16x128xbf16, #tpu.memory_space<vmem>>, vector<1x16x128xbf16>
    %20 = vector.shape_cast %19 : vector<1x16x128xbf16> to vector<16x128xbf16>
    %cst_20 = arith.constant dense<0.000000e+00> : vector<72x128xf32>
    %21 = tpu.matmul %18, %20, %cst_20 {dimension_numbers = #tpu.dot_dimension_numbers<[1], [0], [0], [1], [0, 0, 1, 1], [], []>} : vector<72x16xbf16>, vector<16x128xbf16>, vector<72x128xf32> -> vector<72x128xf32>
    %22 = arith.addf %16, %21 : vector<72x128xf32>
    %c0_21 = arith.constant 0 : index
    %c0_22 = arith.constant 0 : index
    %23 = vector.load %arg3[%c0_21, %c0_22] : memref<2x128xf32, #tpu.memory_space<vmem>>, vector<1x128xf32>
    %24 = vector.broadcast %23 : vector<1x128xf32> to vector<72x128xf32>
    %25 = arith.mulf %22, %24 : vector<72x128xf32>
    %c1_23 = arith.constant 1 : index
    %c0_24 = arith.constant 0 : index
    %26 = vector.load %arg3[%c1_23, %c0_24] : memref<2x128xf32, #tpu.memory_space<vmem>>, vector<1x128xf32>
    %27 = vector.broadcast %26 : vector<1x128xf32> to vector<72x128xf32>
    %28 = arith.addf %25, %27 : vector<72x128xf32>
    %cst_25 = arith.constant 0.000000e+00 : f32
    %29 = vector.broadcast %cst_25 : f32 to vector<72x128xf32>
    %30 = arith.cmpf oge, %28, %29 : vector<72x128xf32>
    %cst_26 = arith.constant 0.00999999977 : f32
    %31 = vector.broadcast %cst_26 : f32 to vector<72x128xf32>
    %32 = arith.mulf %31, %28 : vector<72x128xf32>
    %33 = arith.select %30, %28, %32 : vector<72x128xi1>, vector<72x128xf32>
    %c0_27 = arith.constant 0 : index
    %c0_28 = arith.constant 0 : index
    %c0_29 = arith.constant 0 : index
    %34 = vector.load %arg4[%c0_27, %c0_28, %c0_29] : memref<1x72x128xf32, #tpu.memory_space<vmem>>, vector<1x72x128xf32>
    %35 = vector.shape_cast %34 : vector<1x72x128xf32> to vector<72x128xf32>
    %36 = vector.shape_cast %33 : vector<72x128xf32> to vector<1x72x128xf32>
    tpu.vector_store %arg4[%c0_27, %c0_28, %c0_29], %36 {strides = array<i32>} : memref<1x72x128xf32, #tpu.memory_space<vmem>>, vector<1x72x128xf32>,
    return
  }
  func.func @transform_0(%arg0: i32) -> (i32, i32, i32) {
    %c0_i32 = arith.constant 0 : i32
    %c0_i32_0 = arith.constant 0 : i32
    %c0_i32_1 = arith.constant 0 : i32
    return %arg0, %c0_i32, %c0_i32_0 : i32, i32, i32
  }
  func.func @transform_1(%arg0: i32) -> (i32, i32, i32) {
    %c0_i32 = arith.constant 0 : i32
    %c0_i32_0 = arith.constant 0 : i32
    %c0_i32_1 = arith.constant 0 : i32
    %c0_i32_2 = arith.constant 0 : i32
    return %c0_i32, %c0_i32_0, %c0_i32_1 : i32, i32, i32
  }
  func.func @transform_2(%arg0: i32) -> (i32, i32) {
    %c0_i32 = arith.constant 0 : i32
    %c0_i32_0 = arith.constant 0 : i32
    %c0_i32_1 = arith.constant 0 : i32
    return %c0_i32, %c0_i32_0 : i32, i32
  }
  func.func @transform_3(%arg0: i32) -> (i32, i32, i32) {
    %c0_i32 = arith.constant 0 : i32
    %c0_i32_0 = arith.constant 0 : i32
    %c0_i32_1 = arith.constant 0 : i32
    return %arg0, %c0_i32, %c0_i32_0 : i32, i32, i32
  }
}

</mosaic_0001>

<llo_original>
// kernel: down_conv_forward.2
$region0: #{down_conv_forward.2}
  #allocation0 [shape = 'u32[]', space=smem, size = 0x4, offset = 0x4, fixed_abs, tag = 'smem constant byte address 0x4 - core index']
  #allocation1 [shape = 'u32[144,128]{1,0:T(1,128)}', space=vmem, size = 0x12000, scoped, tag = 'internal scratch']
  %s0 = inlined_call_operand.vmem [shape: bf16[2,90,16], index: 0, kind: input, shape index: {}]
  %s1 = inlined_call_operand.vmem [shape: bf16[4,16,128], index: 1, kind: input, shape index: {}]
  %s2 = inlined_call_operand.vmem [shape: bf16[2,72,1], index: 2, kind: input, shape index: {}]
  %s3 = inlined_call_operand.vmem [shape: f32[2,2,128], index: 3, kind: output, shape index: {}]
  %s4 = sld [smem:[#allocation0]]
  $region45: #{down_conv_forward.2} parent=0
    _
  %s6 = ssub.s32 1, %s4
  %s7 = scalar_select 0, %s6, %s4
  loop: start=0, step=1, limit=4
  $region2: #{down_conv_forward.2} parent=0 // loop_pre_header
    _
  $region3: #{down_conv_forward.2} parent=0 // loop_header
    %s9 = sphi 0, %s13
    %p10 = scmp.ge.s32.totalorder %s9, 4
    %s19 = sphi 0, %s21
    %s22 = sphi 0, %s19
    %s23 = sphi 0, %s22
    %s39 = sphi 0, %s23
    %s43 = sphi 0, %s43
    %s45 = sphi 0, %s43
    %s46 = sphi 0, %s45
    %s60 = sphi 0, %s46
    %s66 = sphi 0, %s68
    %s69 = sphi 0, %s66
    %s70 = sphi 0, %s69
    %s86 = sphi 0, %s70
    %s92 = sphi 0, %s94
    %s95 = sphi 0, %s92
    %s96 = sphi 0, %s95
    %s112 = sphi 0, %s96
  $region4: #{down_conv_forward.2} parent=0 // loop_header_branch
    %12 = sbr.rel (%p10) target = $region8
  $region5: #{down_conv_forward.2} parent=0 // loop_body
    %s14 = ssub.s32 %s9, 1
    %s15 = ssub.s32 %s9, 2
    %s16 = sadd.s32 %s9, 1
    %s17 = ssub.s32 %s9, %s16
    %p18 = scmp.eq.s32.totalorder %s17, 0
    %s20 = sadd.s32 %s19, 1
    %s21 = scalar_select %p18, %s19, %s20
    %p24 = pneg %p18
    %p25 = scmp.eq.s32.totalorder %s9, 1
    %p26 = por %p24, %p25
    %p27 = scmp.ne.s32.totalorder %s19, %s22
    %p28 = scmp.eq.s32.totalorder %s9, 0
    %p29 = por %p27, %p28
    %p30 = scmp.ne.s32.totalorder %s19, %s22
    %p31 = scmp.eq.s32.totalorder %s14, 1
    %p32 = por %p30, %p31
    %p33 = scmp.ne.s32.totalorder %s22, %s23
    %p34 = scmp.eq.s32.totalorder %s14, 0
    %p35 = por %p33, %p34
    %p36 = scmp.ne.s32.totalorder %s22, %s23
    %p37 = scmp.eq.s32.totalorder %s15, 1
    %p38 = por %p36, %p37
    %p40 = scmp.ne.s32.totalorder %s23, %s39
    %p41 = scmp.eq.s32.totalorder %s15, 0
    %p42 = por %p40, %p41
    %s44 = sadd.s32 %s43, 1
    %p47 = scmp.eq.s32.totalorder %s9, 1
    %p48 = scmp.ne.s32.totalorder %s43, %s45
    %p49 = scmp.eq.s32.totalorder %s9, 0
    %p50 = por %p48, %p49
    %p51 = scmp.ne.s32.totalorder %s43, %s45
    %p52 = scmp.eq.s32.totalorder %s14, 1
    %p53 = por %p51, %p52
    %p54 = scmp.ne.s32.totalorder %s45, %s46
    %p55 = scmp.eq.s32.totalorder %s14, 0
    %p56 = por %p54, %p55
    %p57 = scmp.ne.s32.totalorder %s45, %s46
    %p58 = scmp.eq.s32.totalorder %s15, 1
    %p59 = por %p57, %p58
    %p61 = scmp.ne.s32.totalorder %s46, %s60
    %p62 = scmp.eq.s32.totalorder %s15, 0
    %p63 = por %p61, %p62
    %s64 = ssub.s32 %s9, %s16
    %p65 = scmp.eq.s32.totalorder %s64, 0
    %s67 = sadd.s32 %s66, 1
    %s68 = scalar_select %p65, %s66, %s67
    %p71 = pneg %p65
    %p72 = scmp.eq.s32.totalorder %s9, 1
    %p73 = por %p71, %p72
    %p74 = scmp.ne.s32.totalorder %s66, %s69
    %p75 = scmp.eq.s32.totalorder %s9, 0
    %p76 = por %p74, %p75
    %p77 = scmp.ne.s32.totalorder %s66, %s69
    %p78 = scmp.eq.s32.totalorder %s14, 1
    %p79 = por %p77, %p78
    %p80 = scmp.ne.s32.totalorder %s69, %s70
    %p81 = scmp.eq.s32.totalorder %s14, 0
    %p82 = por %p80, %p81
    %p83 = scmp.ne.s32.totalorder %s69, %s70
    %p84 = scmp.eq.s32.totalorder %s15, 1
    %p85 = por %p83, %p84
    %p87 = scmp.ne.s32.totalorder %s70, %s86
    %p88 = scmp.eq.s32.totalorder %s15, 0
    %p89 = por %p87, %p88
    %s90 = ssub.s32 %s9, %s16
    %p91 = scmp.eq.s32.totalorder %s90, 0
    %s93 = sadd.s32 %s92, 1
    %s94 = scalar_select %p91, %s92, %s93
    %p97 = pneg %p91
    %p98 = scmp.eq.s32.totalorder %s9, 1
    %p99 = por %p97, %p98
    %p100 = scmp.ne.s32.totalorder %s92, %s95
    %p101 = scmp.eq.s32.totalorder %s9, 0
    %p102 = por %p100, %p101
    %p103 = scmp.ne.s32.totalorder %s92, %s95
    %p104 = scmp.eq.s32.totalorder %s14, 1
    %p105 = por %p103, %p104
    %p106 = scmp.ne.s32.totalorder %s95, %s96
    %p107 = scmp.eq.s32.totalorder %s14, 0
    %p108 = por %p106, %p107
    %p109 = scmp.ne.s32.totalorder %s95, %s96
    %p110 = scmp.eq.s32.totalorder %s15, 1
    %p111 = por %p109, %p110
    %p113 = scmp.ne.s32.totalorder %s96, %s112
    %p114 = scmp.eq.s32.totalorder %s15, 0
    %p115 = por %p113, %p114
    %p116 = scmp.le.s32.totalorder 1, %s9
    %p117 = scmp.lt.s32.totalorder %s9, 3
    %p118 = pnand %p116, %p117
    %p119 = pneg %p118
    // Predicated region
    $region9: #{down_conv_forward.2} parent=5 // pred_check
      _
    $region10: #{down_conv_forward.2} parent=5 // pred_check_branch
      %121 = sbr.rel (%p118) target = $region12
    $region11: #{down_conv_forward.2} parent=5 // pred_region
      %s122 = ssub.s32 %s9, 1
      // Predicated region
      $region13: #{down_conv_forward.2} parent=11 // pred_check
        %p123 = pneg %p56
      $region14: #{down_conv_forward.2} parent=11 // pred_check_branch
        %125 = sbr.rel (%p123) target = $region16
      $region15: #{down_conv_forward.2} parent=11 // pred_region
        _
      $region16: #{down_conv_forward.2} parent=11 // pred_fallthru
        _
    $region12: #{down_conv_forward.2} parent=5 // pred_fallthru
      _
    %p126 = scmp.lt.s32.totalorder %s9, 2
    // Predicated region
    $region17: #{down_conv_forward.2} parent=5 // pred_check
      %p127 = pneg %p126
    $region18: #{down_conv_forward.2} parent=5 // pred_check_branch
      %129 = sbr.rel (%p127) target = $region20
    $region19: #{down_conv_forward.2} parent=5 // pred_region
      // Predicated region
      $region21: #{down_conv_forward.2} parent=19 // pred_check
        %p130 = pneg %p29
      $region22: #{down_conv_forward.2} parent=19 // pred_check_branch
        %132 = sbr.rel (%p130) target = $region24
      $region23: #{down_conv_forward.2} parent=19 // pred_region
        %p133 = scmp.lt.s32.totalorder %s9, 1
        %s134 = scalar_select %p133, %s9, 1
        %s135 = smul.addr %s134, 12
        %s136 = smul.addr %s135, 4
        %s137 = scalar_lea.vmem %s0, %s136
      $region24: #{down_conv_forward.2} parent=19 // pred_fallthru
        _
      // Predicated region
      $region25: #{down_conv_forward.2} parent=19 // pred_check
        %p138 = pneg %p76
      $region26: #{down_conv_forward.2} parent=19 // pred_check_branch
        %140 = sbr.rel (%p138) target = $region28
      $region27: #{down_conv_forward.2} parent=19 // pred_region
        %p141 = scmp.lt.s32.totalorder %s9, 1
        %s142 = scalar_select %p141, %s9, 1
        %s143 = smul.addr %s142, 9
        %s144 = smul.addr %s143, 4
        %s145 = scalar_lea.vmem %s2, %s144
      $region28: #{down_conv_forward.2} parent=19 // pred_fallthru
        _
    $region20: #{down_conv_forward.2} parent=5 // pred_fallthru
      _
    %p146 = scmp.le.s32.totalorder 1, %s9
    %p147 = scmp.lt.s32.totalorder %s9, 3
    %p148 = pnand %p146, %p147
    %p149 = pneg %p148
    // Predicated region
    $region29: #{down_conv_forward.2} parent=5 // pred_check
      _
    $region30: #{down_conv_forward.2} parent=5 // pred_check_branch
      %151 = sbr.rel (%p148) target = $region32
    $region31: #{down_conv_forward.2} parent=5 // pred_region
      %s152 = ssub.s32 %s9, 1
      %p153 = scmp.lt.s32.totalorder %s14, 1
      %s154 = scalar_select %p153, %s14, 1
      %s155 = smul.addr %s154, 12
      %s156 = smul.addr %s155, 4
      %s157 = scalar_lea.vmem %s0, %s156
      %p158 = pneg %p35
      %p159 = pneg %p32
      %p160 = pneg %p56
      %p161 = pneg %p53
      %p162 = scmp.lt.s32.totalorder %s14, 1
      %s163 = scalar_select %p162, %s14, 1
      %s164 = smul.addr %s163, 9
      %s165 = smul.addr %s164, 4
      %s166 = scalar_lea.vmem %s2, %s165
      %p167 = pneg %p82
      %p168 = pneg %p79
      %p169 = pneg %p108
      %p170 = pneg %p105
      %p171 = scmp.lt.s32.totalorder %s14, 1
      %s172 = scalar_select %p171, %s14, 1
      %s173 = smul.addr %s172, 2
      %s174 = scalar_lea.vmem %s3, %s173
      %p175 = scmp.lt.s32.totalorder %s14, 1
      %s176 = scalar_select %p175, %s14, 1
      %s177 = smul.addr %s176, 12
      %s178 = smul.addr %s177, 4
      %s179 = scalar_lea.vmem %s0, %s178
      %p180 = scmp.lt.s32.totalorder %s14, 1
      %s181 = scalar_select %p180, %s14, 1
      %s182 = smul.addr %s181, 9
      %s183 = smul.addr %s182, 4
      %s184 = scalar_lea.vmem %s2, %s183
      %p185 = scmp.lt.s32.totalorder %s14, 1
      %s186 = scalar_select %p185, %s14, 1
      %s187 = smul.addr %s186, 2
      %s188 = scalar_lea.vmem %s3, %s187
      %v190 = vld [vmem:[%s179] sm:$0xf]
      %v191 = vld [vmem:[%s179 + $0x4] sm:$0xf]
      %v192 = vld [vmem:[%s179 + $0x8] sm:$0xf]
      %v193 = vld [vmem:[%s179 + $0xc] sm:$0xf]
      %v194 = vld [vmem:[%s179 + $0x10] sm:$0xf]
      %v195 = vld [vmem:[%s179 + $0x14] sm:$0xf]
      %v196 = vld [vmem:[%s179 + $0x18] sm:$0xf]
      %v197 = vld [vmem:[%s179 + $0x1c] sm:$0xf]
      %v198 = vld [vmem:[%s179 + $0x20] sm:$0xf]
      %v199 = vld [vmem:[%s1] sm:$0xf]
      %v200 = vld [vmem:[%s1 + $0x4] sm:$0xf]
      %v201 = vld [vmem:[%s179 + $0x24] sm:$0x1]
      %s202 = scalar_lea.vmem %s1, 8
      %v203 = vld [vmem:[%s202] sm:$0xf]
      %v204 = vld [vmem:[%s202 + $0x4] sm:$0xf]
      %v215 = vunpack.c.l.b16 %v190
      %v216 = vunpack.c.l.b16 %v191
      %v217 = vunpack.c.l.b16 %v192
      %v218 = vunpack.c.l.b16 %v193
      %v219 = vunpack.c.l.b16 %v194
      %v220 = vunpack.c.l.b16 %v195
      %v221 = vunpack.c.l.b16 %v196
      %v222 = vunpack.c.l.b16 %v197
      %v223 = vunpack.c.l.b16 %v198
      %v224 = vunpack.c.l.b16 %v201
      %v225 = vpack.c.b16 %v216, %v215
      %v226 = vpack.c.b16 %v218, %v217
      %v227 = vpack.c.b16 %v220, %v219
      %v228 = vpack.c.b16 %v222, %v221
      %v229 = vpack.c.b16 %v224, %v223
      %vm230 = vsmask.f32 7424
      %v232 = vshrl.u32 %v225, 16
      %v234 = vshll.u32 %v225, 16
      %v236 = vrot.slane %v234, 1
      %v237 = vor.u32 %v232, %v236
      %v239 = vshll.u32 %v226, 16
      %v241 = vrot.slane %v239, 1
      %v242 = vsel %vm230, %v237, %v241
      %v243 = vshrl.u32 %v226, 16
      %v245 = vor.u32 %v243, %v241
      %v247 = vshll.u32 %v227, 16
      %v249 = vrot.slane %v247, 1
      %v250 = vsel %vm230, %v245, %v249
      %v251 = vshrl.u32 %v227, 16
      %v253 = vor.u32 %v251, %v249
      %v255 = vshll.u32 %v228, 16
      %v257 = vrot.slane %v255, 1
      %v258 = vsel %vm230, %v253, %v257
      %v259 = vshrl.u32 %v228, 16
      %v261 = vor.u32 %v259, %v257
      %v263 = vshll.u32 %v229, 16
      %v265 = vrot.slane %v263, 1
      %v266 = vsel %vm230, %v261, %v265
      %v267 = vshrl.u32 %v229, 16
      %v269 = vor.u32 %v267, %v265
      %v272 = vunpack.c.l.b16 %v203
      %v273 = vunpack.c.l.b16 %v204
      %v274 = vpack.c.b16 %v273, %v272
      %vm276 = vcmask 130048
      %v278 = vsel %vm276, %v242, 0
      %v281 = vsel %vm276, %v250, 0
      %v284 = vsel %vm276, %v258, 0
      %v287 = vsel %vm276, %v266, 0
      %v290 = vsel %vm276, %v269, 0
      %292 = vmatprep.subr.bf16.mxu0 0
      %293 = vmatpush1.bf16.msra.mxu0 0
      %294 = vmatprep.subr.bf16.mxu0 0
      %295 = vmatpush1.bf16.msra.mxu0 0
      %296 = vmatprep.subr.bf16.mxu0 0
      %297 = vmatpush1.bf16.msra.mxu0 0
      %298 = vmatprep.subr.bf16.mxu0 0
      %299 = vmatpush1.bf16.msra.mxu0 0
      %300 = vmatprep.subr.bf16.mxu0 0
      %301 = vmatpush1.bf16.msra.mxu0 0
      %302 = vmatprep.subr.bf16.mxu0 0
      %303 = vmatpush1.bf16.msra.mxu0 0
      %304 = vmatprep.subr.bf16.mxu0 0
      %305 = vmatpush1.bf16.msra.mxu0 0
      %306 = vmatprep.subr.bf16.mxu0 0
      %307 = vmatpush1.bf16.msra.mxu0 %v274
      %308 = vmatprep.subr.bf16.mxu0 0
      %309 = vmatpush2.bf16.msra.mxu0 0
      %310 = vmatprep.subr.bf16.mxu0 0
      %311 = vmatpush2.bf16.msra.mxu0 0
      %312 = vmatprep.subr.bf16.mxu0 0
      %313 = vmatpush2.bf16.msra.mxu0 0
      %314 = vmatprep.subr.bf16.mxu0 0
      %315 = vmatpush2.bf16.msra.mxu0 0
      %316 = vmatprep.subr.bf16.mxu0 0
      %317 = vmatpush2.bf16.msra.mxu0 0
      %318 = vmatprep.subr.bf16.mxu0 0
      %319 = vmatpush2.bf16.msra.mxu0 0
      %320 = vmatprep.subr.bf16.mxu0 0
      %321 = vmatpush2.bf16.msra.mxu0 0
      %322 = vmatprep.subr.bf16.mxu0 0
      %323 = vmatpush2.bf16.msra.mxu0 0
      %324 = vmatprep.mubr.bf16.mxu0 0
      %325 = vmatmul.mubr.bf16.gmra.mxu0 %v278
      %v326 = vpop.f32.mrf.mxu0
      %v327 = vadd.f32 0.0, %v326
      %v328 = vpop.f32.mrf.mxu0
      %v329 = vpop.f32.mrf.mxu0
      %v330 = vadd.f32 0.0, %v329
      %v331 = vpop.f32.mrf.mxu0
      %332 = vmatprep.mubr.bf16.mxu0 0
      %333 = vmatmul.mubr.bf16.gmra.mxu0 %v281
      %v334 = vpop.f32.mrf.mxu0
      %v335 = vadd.f32 0.0, %v334
      %v336 = vpop.f32.mrf.mxu0
      %v337 = vpop.f32.mrf.mxu0
      %v338 = vadd.f32 0.0, %v337
      %v339 = vpop.f32.mrf.mxu0
      %340 = vmatprep.mubr.bf16.mxu0 0
      %341 = vmatmul.mubr.bf16.gmra.mxu0 %v284
      %v342 = vpop.f32.mrf.mxu0
      %v343 = vadd.f32 0.0, %v342
      %v344 = vpop.f32.mrf.mxu0
      %v345 = vpop.f32.mrf.mxu0
      %v346 = vadd.f32 0.0, %v345
      %v347 = vpop.f32.mrf.mxu0
      %348 = vmatprep.mubr.bf16.mxu0 0
      %349 = vmatmul.mubr.bf16.gmra.mxu0 %v287
      %v350 = vpop.f32.mrf.mxu0
      %v351 = vadd.f32 0.0, %v350
      %v352 = vpop.f32.mrf.mxu0
      %v353 = vpop.f32.mrf.mxu0
      %v354 = vadd.f32 0.0, %v353
      %v355 = vpop.f32.mrf.mxu0
      %356 = vmatprep.mubr.bf16.mxu0 0
      %357 = vmatmul.mubr.bf16.gmra.mxu0 %v290
      %v358 = vpop.f32.mrf.mxu0
      %v359 = vadd.f32 0.0, %v358
      %v360 = vpop.f32.mrf.mxu0
      %v361 = vpop.f32.mrf.mxu0
      %v362 = vpop.f32.mrf.mxu0
      %363 = vdwg.mxu0
      %v364 = vpack.c.b16 %v223, %v223
      %v367 = vunpack.c.l.b16 %v199
      %v368 = vunpack.c.l.b16 %v200
      %v369 = vpack.c.b16 %v368, %v367
      %v371 = vsel %vm276, %v225, 0
      %v373 = vsel %vm276, %v226, 0
      %v375 = vsel %vm276, %v227, 0
      %v377 = vsel %vm276, %v228, 0
      %v380 = vsel %vm276, %v364, 0
      %382 = vmatprep.subr.bf16.mxu0 0
      %383 = vmatpush1.bf16.msra.mxu0 0
      %384 = vmatprep.subr.bf16.mxu0 0
      %385 = vmatpush1.bf16.msra.mxu0 0
      %386 = vmatprep.subr.bf16.mxu0 0
      %387 = vmatpush1.bf16.msra.mxu0 0
      %388 = vmatprep.subr.bf16.mxu0 0
      %389 = vmatpush1.bf16.msra.mxu0 0
      %390 = vmatprep.subr.bf16.mxu0 0
      %391 = vmatpush1.bf16.msra.mxu0 0
      %392 = vmatprep.subr.bf16.mxu0 0
      %393 = vmatpush1.bf16.msra.mxu0 0
      %394 = vmatprep.subr.bf16.mxu0 0
      %395 = vmatpush1.bf16.msra.mxu0 0
      %396 = vmatprep.subr.bf16.mxu0 0
      %397 = vmatpush1.bf16.msra.mxu0 %v369
      %398 = vmatprep.subr.bf16.mxu0 0
      %399 = vmatpush2.bf16.msra.mxu0 0
      %400 = vmatprep.subr.bf16.mxu0 0
      %401 = vmatpush2.bf16.msra.mxu0 0
      %402 = vmatprep.subr.bf16.mxu0 0
      %403 = vmatpush2.bf16.msra.mxu0 0
      %404 = vmatprep.subr.bf16.mxu0 0
      %405 = vmatpush2.bf16.msra.mxu0 0
      %406 = vmatprep.subr.bf16.mxu0 0
      %407 = vmatpush2.bf16.msra.mxu0 0
      %408 = vmatprep.subr.bf16.mxu0 0
      %409 = vmatpush2.bf16.msra.mxu0 0
      %410 = vmatprep.subr.bf16.mxu0 0
      %411 = vmatpush2.bf16.msra.mxu0 0
      %412 = vmatprep.subr.bf16.mxu0 0
      %413 = vmatpush2.bf16.msra.mxu0 0
      %414 = vmatprep.mubr.bf16.mxu0 0
      %415 = vmatmul.mubr.bf16.gmra.mxu0 %v371
      %v416 = vpop.f32.mrf.mxu0
      %v417 = vadd.f32 %v327, %v416
      %v418 = vpop.f32.mrf.mxu0
      %v419 = vpop.f32.mrf.mxu0
      %v420 = vadd.f32 %v330, %v419
      %v421 = vpop.f32.mrf.mxu0
      %422 = vmatprep.mubr.bf16.mxu0 0
      %423 = vmatmul.mubr.bf16.gmra.mxu0 %v373
      %v424 = vpop.f32.mrf.mxu0
      %v425 = vadd.f32 %v335, %v424
      %v426 = vpop.f32.mrf.mxu0
      %v427 = vpop.f32.mrf.mxu0
      %v428 = vadd.f32 %v338, %v427
      %v429 = vpop.f32.mrf.mxu0
      %430 = vmatprep.mubr.bf16.mxu0 0
      %431 = vmatmul.mubr.bf16.gmra.mxu0 %v375
      %v432 = vpop.f32.mrf.mxu0
      %v433 = vadd.f32 %v343, %v432
      %v434 = vpop.f32.mrf.mxu0
      %v435 = vpop.f32.mrf.mxu0
      %v436 = vadd.f32 %v346, %v435
      %v437 = vpop.f32.mrf.mxu0
      %438 = vmatprep.mubr.bf16.mxu0 0
      %439 = vmatmul.mubr.bf16.gmra.mxu0 %v377
      %v440 = vpop.f32.mrf.mxu0
      %v441 = vadd.f32 %v351, %v440
      %v442 = vpop.f32.mrf.mxu0
      %v443 = vpop.f32.mrf.mxu0
      %v444 = vadd.f32 %v354, %v443
      %v445 = vpop.f32.mrf.mxu0
      %446 = vmatprep.mubr.bf16.mxu0 0
      %447 = vmatmul.mubr.bf16.gmra.mxu0 %v380
      %v448 = vpop.f32.mrf.mxu0
      %v449 = vadd.f32 %v359, %v448
      %v450 = vpop.f32.mrf.mxu0
      %v451 = vpop.f32.mrf.mxu0
      %v452 = vpop.f32.mrf.mxu0
      %453 = vdwg.mxu0
      %v454 = vld [vmem:[%s179 + $0x4] sm:$0xf]
      %v455 = vld [vmem:[%s179 + $0x8] sm:$0xf]
      %v456 = vld [vmem:[%s179 + $0xc] sm:$0xf]
      %v457 = vld [vmem:[%s179 + $0x10] sm:$0xf]
      %v458 = vld [vmem:[%s179 + $0x14] sm:$0xf]
      %v459 = vld [vmem:[%s179 + $0x18] sm:$0xf]
      %v460 = vld [vmem:[%s179 + $0x1c] sm:$0xf]
      %v461 = vld [vmem:[%s179 + $0x20] sm:$0xf]
      %v462 = vld [vmem:[%s179 + $0x24] sm:$0xf]
      %v463 = vld [vmem:[%s179 + $0x28] sm:$0x1]
      %s464 = scalar_lea.vmem %s1, 16
      %v465 = vld [vmem:[%s464] sm:$0xf]
      %v466 = vld [vmem:[%s464 + $0x4] sm:$0xf]
      %v477 = vunpack.c.l.b16 %v454
      %v478 = vunpack.c.l.b16 %v455
      %v479 = vunpack.c.l.b16 %v456
      %v480 = vunpack.c.l.b16 %v457
      %v481 = vunpack.c.l.b16 %v458
      %v482 = vunpack.c.l.b16 %v459
      %v483 = vunpack.c.l.b16 %v460
      %v484 = vunpack.c.l.b16 %v461
      %v485 = vunpack.c.l.b16 %v462
      %v486 = vunpack.c.l.b16 %v463
      %v487 = vpack.c.b16 %v478, %v477
      %v488 = vpack.c.b16 %v480, %v479
      %v489 = vpack.c.b16 %v482, %v481
      %v490 = vpack.c.b16 %v484, %v483
      %v491 = vpack.c.b16 %v486, %v485
      %v493 = vshrl.u32 %v487, 16
      %v495 = vshll.u32 %v487, 16
      %v497 = vrot.slane %v495, 1
      %v498 = vor.u32 %v493, %v497
      %v500 = vshll.u32 %v488, 16
      %v502 = vrot.slane %v500, 1
      %v503 = vsel %vm230, %v498, %v502
      %v504 = vshrl.u32 %v488, 16
      %v506 = vor.u32 %v504, %v502
      %v508 = vshll.u32 %v489, 16
      %v510 = vrot.slane %v508, 1
      %v511 = vsel %vm230, %v506, %v510
      %v512 = vshrl.u32 %v489, 16
      %v514 = vor.u32 %v512, %v510
      %v516 = vshll.u32 %v490, 16
      %v518 = vrot.slane %v516, 1
      %v519 = vsel %vm230, %v514, %v518
      %v520 = vshrl.u32 %v490, 16
      %v522 = vor.u32 %v520, %v518
      %v524 = vshll.u32 %v491, 16
      %v526 = vrot.slane %v524, 1
      %v527 = vsel %vm230, %v522, %v526
      %v528 = vshrl.u32 %v491, 16
      %v530 = vor.u32 %v528, %v526
      %v533 = vunpack.c.l.b16 %v465
      %v534 = vunpack.c.l.b16 %v466
      %v535 = vpack.c.b16 %v534, %v533
      %v538 = vsel %vm276, %v503, 0
      %v541 = vsel %vm276, %v511, 0
      %v544 = vsel %vm276, %v519, 0
      %v547 = vsel %vm276, %v527, 0
      %v550 = vsel %vm276, %v530, 0
      %552 = vmatprep.subr.bf16.mxu0 0
      %553 = vmatpush1.bf16.msra.mxu0 0
      %554 = vmatprep.subr.bf16.mxu0 0
      %555 = vmatpush1.bf16.msra.mxu0 0
      %556 = vmatprep.subr.bf16.mxu0 0
      %557 = vmatpush1.bf16.msra.mxu0 0
      %558 = vmatprep.subr.bf16.mxu0 0
      %559 = vmatpush1.bf16.msra.mxu0 0
      %560 = vmatprep.subr.bf16.mxu0 0
      %561 = vmatpush1.bf16.msra.mxu0 0
      %562 = vmatprep.subr.bf16.mxu0 0
      %563 = vmatpush1.bf16.msra.mxu0 0
      %564 = vmatprep.subr.bf16.mxu0 0
      %565 = vmatpush1.bf16.msra.mxu0 0
      %566 = vmatprep.subr.bf16.mxu0 0
      %567 = vmatpush1.bf16.msra.mxu0 %v535
      %568 = vmatprep.subr.bf16.mxu0 0
      %569 = vmatpush2.bf16.msra.mxu0 0
      %570 = vmatprep.subr.bf16.mxu0 0
      %571 = vmatpush2.bf16.msra.mxu0 0
      %572 = vmatprep.subr.bf16.mxu0 0
      %573 = vmatpush2.bf16.msra.mxu0 0
      %574 = vmatprep.subr.bf16.mxu0 0
      %575 = vmatpush2.bf16.msra.mxu0 0
      %576 = vmatprep.subr.bf16.mxu0 0
      %577 = vmatpush2.bf16.msra.mxu0 0
      %578 = vmatprep.subr.bf16.mxu0 0
      %579 = vmatpush2.bf16.msra.mxu0 0
      %580 = vmatprep.subr.bf16.mxu0 0
      %581 = vmatpush2.bf16.msra.mxu0 0
      %582 = vmatprep.subr.bf16.mxu0 0
      %583 = vmatpush2.bf16.msra.mxu0 0
      %584 = vmatprep.mubr.bf16.mxu0 0
      %585 = vmatmul.mubr.bf16.gmra.mxu0 %v538
      %v586 = vpop.f32.mrf.mxu0
      %v587 = vadd.f32 0.0, %v586
      %v588 = vpop.f32.mrf.mxu0
      %v589 = vpop.f32.mrf.mxu0
      %v590 = vadd.f32 0.0, %v589
      %v591 = vpop.f32.mrf.mxu0
      %592 = vmatprep.mubr.bf16.mxu0 0
      %593 = vmatmul.mubr.bf16.gmra.mxu0 %v541
      %v594 = vpop.f32.mrf.mxu0
      %v595 = vadd.f32 0.0, %v594
      %v596 = vpop.f32.mrf.mxu0
      %v597 = vpop.f32.mrf.mxu0
      %v598 = vadd.f32 0.0, %v597
      %v599 = vpop.f32.mrf.mxu0
      %600 = vmatprep.mubr.bf16.mxu0 0
      %601 = vmatmul.mubr.bf16.gmra.mxu0 %v544
      %v602 = vpop.f32.mrf.mxu0
      %v603 = vadd.f32 0.0, %v602
      %v604 = vpop.f32.mrf.mxu0
      %v605 = vpop.f32.mrf.mxu0
      %v606 = vadd.f32 0.0, %v605
      %v607 = vpop.f32.mrf.mxu0
      %608 = vmatprep.mubr.bf16.mxu0 0
      %609 = vmatmul.mubr.bf16.gmra.mxu0 %v547
      %v610 = vpop.f32.mrf.mxu0
      %v611 = vadd.f32 0.0, %v610
      %v612 = vpop.f32.mrf.mxu0
      %v613 = vpop.f32.mrf.mxu0
      %v614 = vadd.f32 0.0, %v613
      %v615 = vpop.f32.mrf.mxu0
      %616 = vmatprep.mubr.bf16.mxu0 0
      %617 = vmatmul.mubr.bf16.gmra.mxu0 %v550
      %v618 = vpop.f32.mrf.mxu0
      %v619 = vadd.f32 0.0, %v618
      %v620 = vpop.f32.mrf.mxu0
      %v621 = vpop.f32.mrf.mxu0
      %v622 = vpop.f32.mrf.mxu0
      %623 = vdwg.mxu0
      %v624 = vadd.f32 %v417, %v587
      %v625 = vadd.f32 %v420, %v590
      %v626 = vadd.f32 %v425, %v595
      %v627 = vadd.f32 %v428, %v598
      %v628 = vadd.f32 %v433, %v603
      %v629 = vadd.f32 %v436, %v606
      %v630 = vadd.f32 %v441, %v611
      %v631 = vadd.f32 %v444, %v614
      %v632 = vadd.f32 %v449, %v619
      %v633 = vld [vmem:[%s179 + $0x4] sm:$0xe]
      %s634 = scalar_lea.vmem %s1, 24
      %v635 = vld [vmem:[%s634] sm:$0xf]
      %v636 = vld [vmem:[%s634 + $0x4] sm:$0xf]
      %v638 = vunpack.c.l.b16 %v633
      %v639 = vpack.c.b16 %v478, %v638
      %vm640 = vcmask 1046528
      %v641 = vrot.slane %v639, 1
      %v642 = vrot.slane %v488, 1
      %v643 = vsel %vm640, %v641, %v642
      %v644 = vrot.slane %v489, 1
      %v645 = vsel %vm640, %v642, %v644
      %v646 = vrot.slane %v490, 1
      %v647 = vsel %vm640, %v644, %v646
      %v648 = vrot.slane %v491, 1
      %v649 = vsel %vm640, %v646, %v648
      %v652 = vunpack.c.l.b16 %v635
      %v653 = vunpack.c.l.b16 %v636
      %v654 = vpack.c.b16 %v653, %v652
      %v657 = vsel %vm276, %v643, 0
      %v660 = vsel %vm276, %v645, 0
      %v663 = vsel %vm276, %v647, 0
      %v666 = vsel %vm276, %v649, 0
      %v669 = vsel %vm276, %v648, 0
      %671 = vmatprep.subr.bf16.mxu0 0
      %672 = vmatpush1.bf16.msra.mxu0 0
      %673 = vmatprep.subr.bf16.mxu0 0
      %674 = vmatpush1.bf16.msra.mxu0 0
      %675 = vmatprep.subr.bf16.mxu0 0
      %676 = vmatpush1.bf16.msra.mxu0 0
      %677 = vmatprep.subr.bf16.mxu0 0
      %678 = vmatpush1.bf16.msra.mxu0 0
      %679 = vmatprep.subr.bf16.mxu0 0
      %680 = vmatpush1.bf16.msra.mxu0 0
      %681 = vmatprep.subr.bf16.mxu0 0
      %682 = vmatpush1.bf16.msra.mxu0 0
      %683 = vmatprep.subr.bf16.mxu0 0
      %684 = vmatpush1.bf16.msra.mxu0 0
      %685 = vmatprep.subr.bf16.mxu0 0
      %686 = vmatpush1.bf16.msra.mxu0 %v654
      %687 = vmatprep.subr.bf16.mxu0 0
      %688 = vmatpush2.bf16.msra.mxu0 0
      %689 = vmatprep.subr.bf16.mxu0 0
      %690 = vmatpush2.bf16.msra.mxu0 0
      %691 = vmatprep.subr.bf16.mxu0 0
      %692 = vmatpush2.bf16.msra.mxu0 0
      %693 = vmatprep.subr.bf16.mxu0 0
      %694 = vmatpush2.bf16.msra.mxu0 0
      %695 = vmatprep.subr.bf16.mxu0 0
      %696 = vmatpush2.bf16.msra.mxu0 0
      %697 = vmatprep.subr.bf16.mxu0 0
      %698 = vmatpush2.bf16.msra.mxu0 0
      %699 = vmatprep.subr.bf16.mxu0 0
      %700 = vmatpush2.bf16.msra.mxu0 0
      %701 = vmatprep.subr.bf16.mxu0 0
      %702 = vmatpush2.bf16.msra.mxu0 0
      %703 = vmatprep.mubr.bf16.mxu0 0
      %704 = vmatmul.mubr.bf16.gmra.mxu0 %v657
      %v705 = vpop.f32.mrf.mxu0
      %v706 = vadd.f32 0.0, %v705
      %v707 = vpop.f32.mrf.mxu0
      %v708 = vpop.f32.mrf.mxu0
      %v709 = vadd.f32 0.0, %v708
      %v710 = vpop.f32.mrf.mxu0
      %711 = vmatprep.mubr.bf16.mxu0 0
      %712 = vmatmul.mubr.bf16.gmra.mxu0 %v660
      %v713 = vpop.f32.mrf.mxu0
      %v714 = vadd.f32 0.0, %v713
      %v715 = vpop.f32.mrf.mxu0
      %v716 = vpop.f32.mrf.mxu0
      %v717 = vadd.f32 0.0, %v716
      %v718 = vpop.f32.mrf.mxu0
      %719 = vmatprep.mubr.bf16.mxu0 0
      %720 = vmatmul.mubr.bf16.gmra.mxu0 %v663
      %v721 = vpop.f32.mrf.mxu0
      %v722 = vadd.f32 0.0, %v721
      %v723 = vpop.f32.mrf.mxu0
      %v724 = vpop.f32.mrf.mxu0
      %v725 = vadd.f32 0.0, %v724
      %v726 = vpop.f32.mrf.mxu0
      %727 = vmatprep.mubr.bf16.mxu0 0
      %728 = vmatmul.mubr.bf16.gmra.mxu0 %v666
      %v729 = vpop.f32.mrf.mxu0
      %v730 = vadd.f32 0.0, %v729
      %v731 = vpop.f32.mrf.mxu0
      %v732 = vpop.f32.mrf.mxu0
      %v733 = vadd.f32 0.0, %v732
      %v734 = vpop.f32.mrf.mxu0
      %735 = vmatprep.mubr.bf16.mxu0 0
      %736 = vmatmul.mubr.bf16.gmra.mxu0 %v669
      %v737 = vpop.f32.mrf.mxu0
      %v738 = vadd.f32 0.0, %v737
      %v739 = vpop.f32.mrf.mxu0
      %v740 = vpop.f32.mrf.mxu0
      %v741 = vpop.f32.mrf.mxu0
      %742 = vdwg.mxu0
      %v743 = vadd.f32 %v624, %v706
      %v744 = vadd.f32 %v625, %v709
      %v745 = vadd.f32 %v626, %v714
      %v746 = vadd.f32 %v627, %v717
      %v747 = vadd.f32 %v628, %v722
      %v748 = vadd.f32 %v629, %v725
      %v749 = vadd.f32 %v630, %v730
      %v750 = vadd.f32 %v631, %v733
      %v751 = vadd.f32 %v632, %v738
      %v752 = vld [vmem:[%s184] sm:$0xf]
      %v753 = vld [vmem:[%s184 + $0x4] sm:$0xf]
      %v754 = vld [vmem:[%s184 + $0x8] sm:$0xf]
      %v755 = vld [vmem:[%s184 + $0xc] sm:$0xf]
      %v756 = vld [vmem:[%s184 + $0x10] sm:$0xf]
      %v757 = vld [vmem:[%s184 + $0x14] sm:$0xf]
      %v758 = vld [vmem:[%s184 + $0x18] sm:$0xf]
      %v759 = vld [vmem:[%s184 + $0x1c] sm:$0xf]
      %v760 = vld [vmem:[%s184 + $0x20] sm:$0xf]
      %v761 = vunpack.c.l.bf16 %v752
      %v762 = vunpack.c.l.bf16 %v753
      %v763 = vunpack.c.l.bf16 %v754
      %v764 = vunpack.c.l.bf16 %v755
      %v765 = vunpack.c.l.bf16 %v756
      %v766 = vunpack.c.l.bf16 %v757
      %v767 = vunpack.c.l.bf16 %v758
      %v768 = vunpack.c.l.bf16 %v759
      %v769 = vunpack.c.l.bf16 %v760
      %771 = vset.pattern.permute.xlu0 0
      %772 = vperm.xlu0 %771, %v761
      %v773 = vpop.permute.xlu0 %772
      %776 = vset.pattern.permute.xlu0 0
      %777 = vperm.xlu0 %776, %v762
      %v778 = vpop.permute.xlu0 %777
      %781 = vset.pattern.permute.xlu0 0
      %782 = vperm.xlu0 %781, %v763
      %v783 = vpop.permute.xlu0 %782
      %786 = vset.pattern.permute.xlu0 0
      %787 = vperm.xlu0 %786, %v764
      %v788 = vpop.permute.xlu0 %787
      %791 = vset.pattern.permute.xlu0 0
      %792 = vperm.xlu0 %791, %v765
      %v793 = vpop.permute.xlu0 %792
      %796 = vset.pattern.permute.xlu0 0
      %797 = vperm.xlu0 %796, %v766
      %v798 = vpop.permute.xlu0 %797
      %801 = vset.pattern.permute.xlu0 0
      %802 = vperm.xlu0 %801, %v767
      %v803 = vpop.permute.xlu0 %802
      %806 = vset.pattern.permute.xlu0 0
      %807 = vperm.xlu0 %806, %v768
      %v808 = vpop.permute.xlu0 %807
      %811 = vset.pattern.permute.xlu0 0
      %812 = vperm.xlu0 %811, %v769
      %v813 = vpop.permute.xlu0 %812
      %v815 = vmul.f32 %v743, %v773
      %v816 = vmul.f32 %v744, %v778
      %v817 = vmul.f32 %v745, %v783
      %v818 = vmul.f32 %v746, %v788
      %v819 = vmul.f32 %v747, %v793
      %v820 = vmul.f32 %v748, %v798
      %v821 = vmul.f32 %v749, %v803
      %v822 = vmul.f32 %v750, %v808
      %v823 = vmul.f32 %v751, %v813
      %v824 = vadd.f32 %v815, %v816
      %v825 = vadd.f32 %v824, %v817
      %v826 = vadd.f32 %v825, %v818
      %v827 = vadd.f32 %v826, %v819
      %v828 = vadd.f32 %v827, %v820
      %v829 = vadd.f32 %v828, %v821
      %v830 = vadd.f32 %v829, %v822
      %v831 = vadd.f32 %v830, %v823
      %v832 = vrot.slane %v831, 4
      %v833 = vadd.f32 %v831, %v832
      %v834 = vrot.slane %v833, 2
      %v835 = vadd.f32 %v833, %v834
      %v836 = vrot.slane %v835, 1
      %v837 = vadd.f32 %v835, %v836
      %838 = vst [vmem:[%s188] sm:$0x1] %v837
      %v839 = vmul.f32 %v815, %v743
      %v840 = vmul.f32 %v816, %v744
      %v841 = vmul.f32 %v817, %v745
      %v842 = vmul.f32 %v818, %v746
      %v843 = vmul.f32 %v819, %v747
      %v844 = vmul.f32 %v820, %v748
      %v845 = vmul.f32 %v821, %v749
      %v846 = vmul.f32 %v822, %v750
      %v847 = vmul.f32 %v823, %v751
      %v848 = vadd.f32 %v839, %v840
      %v849 = vadd.f32 %v848, %v841
      %v850 = vadd.f32 %v849, %v842
      %v851 = vadd.f32 %v850, %v843
      %v852 = vadd.f32 %v851, %v844
      %v853 = vadd.f32 %v852, %v845
      %v854 = vadd.f32 %v853, %v846
      %v855 = vadd.f32 %v854, %v847
      %v856 = vrot.slane %v855, 4
      %v857 = vadd.f32 %v855, %v856
      %v858 = vrot.slane %v857, 2
      %v859 = vadd.f32 %v857, %v858
      %v860 = vrot.slane %v859, 1
      %v861 = vadd.f32 %v859, %v860
      %862 = vst [vmem:[%s188 + $0x1] sm:$0x1] %v861
      %p863 = scmp.lt.s32.totalorder %s14, 1
      %s864 = scalar_select %p863, %s14, 1
      %s865 = smul.addr %s864, 2
      %s866 = scalar_lea.vmem %s3, %s865
      // Predicated region
      $region33: #{down_conv_forward.2} parent=31 // pred_check
        %p867 = pneg %p105
      $region34: #{down_conv_forward.2} parent=31 // pred_check_branch
        %869 = sbr.rel (%p867) target = $region36
      $region35: #{down_conv_forward.2} parent=31 // pred_region
        _
      $region36: #{down_conv_forward.2} parent=31 // pred_fallthru
        _
    $region32: #{down_conv_forward.2} parent=5 // pred_fallthru
      _
    %p870 = scmp.le.s32.totalorder 2, %s9
    // Predicated region
    $region37: #{down_conv_forward.2} parent=5 // pred_check
      %p871 = pneg %p870
    $region38: #{down_conv_forward.2} parent=5 // pred_check_branch
      %873 = sbr.rel (%p871) target = $region40
    $region39: #{down_conv_forward.2} parent=5 // pred_region
      %s874 = ssub.s32 %s9, 2
      // Predicated region
      $region41: #{down_conv_forward.2} parent=39 // pred_check
        %p875 = pneg %p111
      $region42: #{down_conv_forward.2} parent=39 // pred_check_branch
        %877 = sbr.rel (%p875) target = $region44
      $region43: #{down_conv_forward.2} parent=39 // pred_region
        %p878 = scmp.lt.s32.totalorder %s15, 1
        %s879 = scalar_select %p878, %s15, 1
        %s880 = smul.addr %s879, 2
        %s881 = scalar_lea.vmem %s3, %s880
      $region44: #{down_conv_forward.2} parent=39 // pred_fallthru
        _
    $region40: #{down_conv_forward.2} parent=5 // pred_fallthru
      _
  $region6: #{down_conv_forward.2} parent=0 // loop_footer
    %s13 = sadd.s32 1, %s9
  $region7: #{down_conv_forward.2} parent=0 // loop_footer_branch
    %8 = sbr.rel target = $region3
  $region8: #{down_conv_forward.2} parent=0 // loop_exit
    _

// kernel: down_conv_forward.3
$region0: #{down_conv_forward.3}
  #allocation0 [shape = 'u32[]', space=smem, size = 0x4, offset = 0x4, fixed_abs, tag = 'smem constant byte address 0x4 - core index']
  #allocation1 [shape = 'u32[144,128]{1,0:T(1,128)}', space=vmem, size = 0x12000, scoped, tag = 'internal scratch']
  %s0 = inlined_call_operand.vmem [shape: bf16[2,90,16], index: 0, kind: input, shape index: {}]
  %s1 = inlined_call_operand.vmem [shape: bf16[4,16,128], index: 1, kind: input, shape index: {}]
  %s2 = inlined_call_operand.vmem [shape: f32[2,128], index: 2, kind: input, shape index: {}]
  %s3 = inlined_call_operand.vmem [shape: f32[2,72,128], index: 3, kind: output, shape index: {}]
  %s4 = sld [smem:[#allocation0]]
  $region45: #{down_conv_forward.3} parent=0
    _
  %s6 = ssub.s32 1, %s4
  %s7 = scalar_select 0, %s6, %s4
  loop: start=0, step=1, limit=4
  $region2: #{down_conv_forward.3} parent=0 // loop_pre_header
    _
  $region3: #{down_conv_forward.3} parent=0 // loop_header
    %s9 = sphi 0, %s13
    %p10 = scmp.ge.s32.totalorder %s9, 4
    %s19 = sphi 0, %s21
    %s22 = sphi 0, %s19
    %s23 = sphi 0, %s22
    %s39 = sphi 0, %s23
    %s43 = sphi 0, %s43
    %s45 = sphi 0, %s43
    %s46 = sphi 0, %s45
    %s60 = sphi 0, %s46
    %s64 = sphi 0, %s64
    %s66 = sphi 0, %s64
    %s67 = sphi 0, %s66
    %s81 = sphi 0, %s67
    %s87 = sphi 0, %s89
    %s90 = sphi 0, %s87
    %s91 = sphi 0, %s90
    %s107 = sphi 0, %s91
  $region4: #{down_conv_forward.3} parent=0 // loop_header_branch
    %12 = sbr.rel (%p10) target = $region8
  $region5: #{down_conv_forward.3} parent=0 // loop_body
    %s14 = ssub.s32 %s9, 1
    %s15 = ssub.s32 %s9, 2
    %s16 = sadd.s32 %s9, 1
    %s17 = ssub.s32 %s9, %s16
    %p18 = scmp.eq.s32.totalorder %s17, 0
    %s20 = sadd.s32 %s19, 1
    %s21 = scalar_select %p18, %s19, %s20
    %p24 = pneg %p18
    %p25 = scmp.eq.s32.totalorder %s9, 1
    %p26 = por %p24, %p25
    %p27 = scmp.ne.s32.totalorder %s19, %s22
    %p28 = scmp.eq.s32.totalorder %s9, 0
    %p29 = por %p27, %p28
    %p30 = scmp.ne.s32.totalorder %s19, %s22
    %p31 = scmp.eq.s32.totalorder %s14, 1
    %p32 = por %p30, %p31
    %p33 = scmp.ne.s32.totalorder %s22, %s23
    %p34 = scmp.eq.s32.totalorder %s14, 0
    %p35 = por %p33, %p34
    %p36 = scmp.ne.s32.totalorder %s22, %s23
    %p37 = scmp.eq.s32.totalorder %s15, 1
    %p38 = por %p36, %p37
    %p40 = scmp.ne.s32.totalorder %s23, %s39
    %p41 = scmp.eq.s32.totalorder %s15, 0
    %p42 = por %p40, %p41
    %s44 = sadd.s32 %s43, 1
    %p47 = scmp.eq.s32.totalorder %s9, 1
    %p48 = scmp.ne.s32.totalorder %s43, %s45
    %p49 = scmp.eq.s32.totalorder %s9, 0
    %p50 = por %p48, %p49
    %p51 = scmp.ne.s32.totalorder %s43, %s45
    %p52 = scmp.eq.s32.totalorder %s14, 1
    %p53 = por %p51, %p52
    %p54 = scmp.ne.s32.totalorder %s45, %s46
    %p55 = scmp.eq.s32.totalorder %s14, 0
    %p56 = por %p54, %p55
    %p57 = scmp.ne.s32.totalorder %s45, %s46
    %p58 = scmp.eq.s32.totalorder %s15, 1
    %p59 = por %p57, %p58
    %p61 = scmp.ne.s32.totalorder %s46, %s60
    %p62 = scmp.eq.s32.totalorder %s15, 0
    %p63 = por %p61, %p62
    %s65 = sadd.s32 %s64, 1
    %p68 = scmp.eq.s32.totalorder %s9, 1
    %p69 = scmp.ne.s32.totalorder %s64, %s66
    %p70 = scmp.eq.s32.totalorder %s9, 0
    %p71 = por %p69, %p70
    %p72 = scmp.ne.s32.totalorder %s64, %s66
    %p73 = scmp.eq.s32.totalorder %s14, 1
    %p74 = por %p72, %p73
    %p75 = scmp.ne.s32.totalorder %s66, %s67
    %p76 = scmp.eq.s32.totalorder %s14, 0
    %p77 = por %p75, %p76
    %p78 = scmp.ne.s32.totalorder %s66, %s67
    %p79 = scmp.eq.s32.totalorder %s15, 1
    %p80 = por %p78, %p79
    %p82 = scmp.ne.s32.totalorder %s67, %s81
    %p83 = scmp.eq.s32.totalorder %s15, 0
    %p84 = por %p82, %p83
    %s85 = ssub.s32 %s9, %s16
    %p86 = scmp.eq.s32.totalorder %s85, 0
    %s88 = sadd.s32 %s87, 1
    %s89 = scalar_select %p86, %s87, %s88
    %p92 = pneg %p86
    %p93 = scmp.eq.s32.totalorder %s9, 1
    %p94 = por %p92, %p93
    %p95 = scmp.ne.s32.totalorder %s87, %s90
    %p96 = scmp.eq.s32.totalorder %s9, 0
    %p97 = por %p95, %p96
    %p98 = scmp.ne.s32.totalorder %s87, %s90
    %p99 = scmp.eq.s32.totalorder %s14, 1
    %p100 = por %p98, %p99
    %p101 = scmp.ne.s32.totalorder %s90, %s91
    %p102 = scmp.eq.s32.totalorder %s14, 0
    %p103 = por %p101, %p102
    %p104 = scmp.ne.s32.totalorder %s90, %s91
    %p105 = scmp.eq.s32.totalorder %s15, 1
    %p106 = por %p104, %p105
    %p108 = scmp.ne.s32.totalorder %s91, %s107
    %p109 = scmp.eq.s32.totalorder %s15, 0
    %p110 = por %p108, %p109
    %p111 = scmp.le.s32.totalorder 1, %s9
    %p112 = scmp.lt.s32.totalorder %s9, 3
    %p113 = pnand %p111, %p112
    %p114 = pneg %p113
    // Predicated region
    $region9: #{down_conv_forward.3} parent=5 // pred_check
      _
    $region10: #{down_conv_forward.3} parent=5 // pred_check_branch
      %116 = sbr.rel (%p113) target = $region12
    $region11: #{down_conv_forward.3} parent=5 // pred_region
      %s117 = ssub.s32 %s9, 1
      // Predicated region
      $region13: #{down_conv_forward.3} parent=11 // pred_check
        %p118 = pneg %p56
      $region14: #{down_conv_forward.3} parent=11 // pred_check_branch
        %120 = sbr.rel (%p118) target = $region16
      $region15: #{down_conv_forward.3} parent=11 // pred_region
        _
      $region16: #{down_conv_forward.3} parent=11 // pred_fallthru
        _
      // Predicated region
      $region17: #{down_conv_forward.3} parent=11 // pred_check
        %p121 = pneg %p77
      $region18: #{down_conv_forward.3} parent=11 // pred_check_branch
        %123 = sbr.rel (%p121) target = $region20
      $region19: #{down_conv_forward.3} parent=11 // pred_region
        _
      $region20: #{down_conv_forward.3} parent=11 // pred_fallthru
        _
    $region12: #{down_conv_forward.3} parent=5 // pred_fallthru
      _
    %p124 = scmp.lt.s32.totalorder %s9, 2
    // Predicated region
    $region21: #{down_conv_forward.3} parent=5 // pred_check
      %p125 = pneg %p124
    $region22: #{down_conv_forward.3} parent=5 // pred_check_branch
      %127 = sbr.rel (%p125) target = $region24
    $region23: #{down_conv_forward.3} parent=5 // pred_region
      // Predicated region
      $region25: #{down_conv_forward.3} parent=23 // pred_check
        %p128 = pneg %p29
      $region26: #{down_conv_forward.3} parent=23 // pred_check_branch
        %130 = sbr.rel (%p128) target = $region28
      $region27: #{down_conv_forward.3} parent=23 // pred_region
        %p131 = scmp.lt.s32.totalorder %s9, 1
        %s132 = scalar_select %p131, %s9, 1
        %s133 = smul.addr %s132, 12
        %s134 = smul.addr %s133, 4
        %s135 = scalar_lea.vmem %s0, %s134
      $region28: #{down_conv_forward.3} parent=23 // pred_fallthru
        _
    $region24: #{down_conv_forward.3} parent=5 // pred_fallthru
      _
    %p136 = scmp.le.s32.totalorder 1, %s9
    %p137 = scmp.lt.s32.totalorder %s9, 3
    %p138 = pnand %p136, %p137
    %p139 = pneg %p138
    // Predicated region
    $region29: #{down_conv_forward.3} parent=5 // pred_check
      _
    $region30: #{down_conv_forward.3} parent=5 // pred_check_branch
      %141 = sbr.rel (%p138) target = $region32
    $region31: #{down_conv_forward.3} parent=5 // pred_region
      %s142 = ssub.s32 %s9, 1
      %p143 = scmp.lt.s32.totalorder %s14, 1
      %s144 = scalar_select %p143, %s14, 1
      %s145 = smul.addr %s144, 12
      %s146 = smul.addr %s145, 4
      %s147 = scalar_lea.vmem %s0, %s146
      %p148 = pneg %p35
      %p149 = pneg %p32
      %p150 = pneg %p56
      %p151 = pneg %p53
      %p152 = pneg %p77
      %p153 = pneg %p74
      %p154 = pneg %p103
      %p155 = pneg %p100
      %p156 = scmp.lt.s32.totalorder %s14, 1
      %s157 = scalar_select %p156, %s14, 1
      %s158 = smul.addr %s157, 9
      %s159 = smul.addr %s158, 8
      %s160 = scalar_lea.vmem %s3, %s159
      %p161 = scmp.lt.s32.totalorder %s14, 1
      %s162 = scalar_select %p161, %s14, 1
      %s163 = smul.addr %s162, 12
      %s164 = smul.addr %s163, 4
      %s165 = scalar_lea.vmem %s0, %s164
      %p166 = scmp.lt.s32.totalorder %s14, 1
      %s167 = scalar_select %p166, %s14, 1
      %s168 = smul.addr %s167, 9
      %s169 = smul.addr %s168, 8
      %s170 = scalar_lea.vmem %s3, %s169
      %v172 = vld [vmem:[%s165] sm:$0xf]
      %v173 = vld [vmem:[%s165 + $0x4] sm:$0xf]
      %v174 = vld [vmem:[%s165 + $0x8] sm:$0xf]
      %v175 = vld [vmem:[%s165 + $0xc] sm:$0xf]
      %v176 = vld [vmem:[%s165 + $0x10] sm:$0xf]
      %v177 = vld [vmem:[%s165 + $0x14] sm:$0xf]
      %v178 = vld [vmem:[%s165 + $0x18] sm:$0xf]
      %v179 = vld [vmem:[%s165 + $0x1c] sm:$0xf]
      %v180 = vld [vmem:[%s165 + $0x20] sm:$0xf]
      %v181 = vld [vmem:[%s1] sm:$0xf]
      %v182 = vld [vmem:[%s1 + $0x4] sm:$0xf]
      %v183 = vld [vmem:[%s165 + $0x24] sm:$0x1]
      %s184 = scalar_lea.vmem %s1, 8
      %v185 = vld [vmem:[%s184] sm:$0xf]
      %v186 = vld [vmem:[%s184 + $0x4] sm:$0xf]
      %v197 = vunpack.c.l.b16 %v172
      %v198 = vunpack.c.l.b16 %v173
      %v199 = vunpack.c.l.b16 %v174
      %v200 = vunpack.c.l.b16 %v175
      %v201 = vunpack.c.l.b16 %v176
      %v202 = vunpack.c.l.b16 %v177
      %v203 = vunpack.c.l.b16 %v178
      %v204 = vunpack.c.l.b16 %v179
      %v205 = vunpack.c.l.b16 %v180
      %v206 = vunpack.c.l.b16 %v183
      %v207 = vpack.c.b16 %v198, %v197
      %v208 = vpack.c.b16 %v200, %v199
      %v209 = vpack.c.b16 %v202, %v201
      %v210 = vpack.c.b16 %v204, %v203
      %v211 = vpack.c.b16 %v206, %v205
      %vm212 = vsmask.f32 7424
      %v214 = vshrl.u32 %v207, 16
      %v216 = vshll.u32 %v207, 16
      %v218 = vrot.slane %v216, 1
      %v219 = vor.u32 %v214, %v218
      %v221 = vshll.u32 %v208, 16
      %v223 = vrot.slane %v221, 1
      %v224 = vsel %vm212, %v219, %v223
      %v225 = vshrl.u32 %v208, 16
      %v227 = vor.u32 %v225, %v223
      %v229 = vshll.u32 %v209, 16
      %v231 = vrot.slane %v229, 1
      %v232 = vsel %vm212, %v227, %v231
      %v233 = vshrl.u32 %v209, 16
      %v235 = vor.u32 %v233, %v231
      %v237 = vshll.u32 %v210, 16
      %v239 = vrot.slane %v237, 1
      %v240 = vsel %vm212, %v235, %v239
      %v241 = vshrl.u32 %v210, 16
      %v243 = vor.u32 %v241, %v239
      %v245 = vshll.u32 %v211, 16
      %v247 = vrot.slane %v245, 1
      %v248 = vsel %vm212, %v243, %v247
      %v249 = vshrl.u32 %v211, 16
      %v251 = vor.u32 %v249, %v247
      %v254 = vunpack.c.l.b16 %v185
      %v255 = vunpack.c.l.b16 %v186
      %v256 = vpack.c.b16 %v255, %v254
      %vm258 = vcmask 130048
      %v260 = vsel %vm258, %v224, 0
      %v263 = vsel %vm258, %v232, 0
      %v266 = vsel %vm258, %v240, 0
      %v269 = vsel %vm258, %v248, 0
      %v272 = vsel %vm258, %v251, 0
      %274 = vmatprep.subr.bf16.mxu0 0
      %275 = vmatpush1.bf16.msra.mxu0 0
      %276 = vmatprep.subr.bf16.mxu0 0
      %277 = vmatpush1.bf16.msra.mxu0 0
      %278 = vmatprep.subr.bf16.mxu0 0
      %279 = vmatpush1.bf16.msra.mxu0 0
      %280 = vmatprep.subr.bf16.mxu0 0
      %281 = vmatpush1.bf16.msra.mxu0 0
      %282 = vmatprep.subr.bf16.mxu0 0
      %283 = vmatpush1.bf16.msra.mxu0 0
      %284 = vmatprep.subr.bf16.mxu0 0
      %285 = vmatpush1.bf16.msra.mxu0 0
      %286 = vmatprep.subr.bf16.mxu0 0
      %287 = vmatpush1.bf16.msra.mxu0 0
      %288 = vmatprep.subr.bf16.mxu0 0
      %289 = vmatpush1.bf16.msra.mxu0 %v256
      %290 = vmatprep.subr.bf16.mxu0 0
      %291 = vmatpush2.bf16.msra.mxu0 0
      %292 = vmatprep.subr.bf16.mxu0 0
      %293 = vmatpush2.bf16.msra.mxu0 0
      %294 = vmatprep.subr.bf16.mxu0 0
      %295 = vmatpush2.bf16.msra.mxu0 0
      %296 = vmatprep.subr.bf16.mxu0 0
      %297 = vmatpush2.bf16.msra.mxu0 0
      %298 = vmatprep.subr.bf16.mxu0 0
      %299 = vmatpush2.bf16.msra.mxu0 0
      %300 = vmatprep.subr.bf16.mxu0 0
      %301 = vmatpush2.bf16.msra.mxu0 0
      %302 = vmatprep.subr.bf16.mxu0 0
      %303 = vmatpush2.bf16.msra.mxu0 0
      %304 = vmatprep.subr.bf16.mxu0 0
      %305 = vmatpush2.bf16.msra.mxu0 0
      %306 = vmatprep.mubr.bf16.mxu0 0
      %307 = vmatmul.mubr.bf16.gmra.mxu0 %v260
      %v308 = vpop.f32.mrf.mxu0
      %v309 = vadd.f32 0.0, %v308
      %v310 = vpop.f32.mrf.mxu0
      %v311 = vpop.f32.mrf.mxu0
      %v312 = vadd.f32 0.0, %v311
      %v313 = vpop.f32.mrf.mxu0
      %314 = vmatprep.mubr.bf16.mxu0 0
      %315 = vmatmul.mubr.bf16.gmra.mxu0 %v263
      %v316 = vpop.f32.mrf.mxu0
      %v317 = vadd.f32 0.0, %v316
      %v318 = vpop.f32.mrf.mxu0
      %v319 = vpop.f32.mrf.mxu0
      %v320 = vadd.f32 0.0, %v319
      %v321 = vpop.f32.mrf.mxu0
      %322 = vmatprep.mubr.bf16.mxu0 0
      %323 = vmatmul.mubr.bf16.gmra.mxu0 %v266
      %v324 = vpop.f32.mrf.mxu0
      %v325 = vadd.f32 0.0, %v324
      %v326 = vpop.f32.mrf.mxu0
      %v327 = vpop.f32.mrf.mxu0
      %v328 = vadd.f32 0.0, %v327
      %v329 = vpop.f32.mrf.mxu0
      %330 = vmatprep.mubr.bf16.mxu0 0
      %331 = vmatmul.mubr.bf16.gmra.mxu0 %v269
      %v332 = vpop.f32.mrf.mxu0
      %v333 = vadd.f32 0.0, %v332
      %v334 = vpop.f32.mrf.mxu0
      %v335 = vpop.f32.mrf.mxu0
      %v336 = vadd.f32 0.0, %v335
      %v337 = vpop.f32.mrf.mxu0
      %338 = vmatprep.mubr.bf16.mxu0 0
      %339 = vmatmul.mubr.bf16.gmra.mxu0 %v272
      %v340 = vpop.f32.mrf.mxu0
      %v341 = vadd.f32 0.0, %v340
      %v342 = vpop.f32.mrf.mxu0
      %v343 = vpop.f32.mrf.mxu0
      %v344 = vpop.f32.mrf.mxu0
      %345 = vdwg.mxu0
      %v346 = vpack.c.b16 %v205, %v205
      %v349 = vunpack.c.l.b16 %v181
      %v350 = vunpack.c.l.b16 %v182
      %v351 = vpack.c.b16 %v350, %v349
      %v353 = vsel %vm258, %v207, 0
      %v355 = vsel %vm258, %v208, 0
      %v357 = vsel %vm258, %v209, 0
      %v359 = vsel %vm258, %v210, 0
      %v362 = vsel %vm258, %v346, 0
      %364 = vmatprep.subr.bf16.mxu0 0
      %365 = vmatpush1.bf16.msra.mxu0 0
      %366 = vmatprep.subr.bf16.mxu0 0
      %367 = vmatpush1.bf16.msra.mxu0 0
      %368 = vmatprep.subr.bf16.mxu0 0
      %369 = vmatpush1.bf16.msra.mxu0 0
      %370 = vmatprep.subr.bf16.mxu0 0
      %371 = vmatpush1.bf16.msra.mxu0 0
      %372 = vmatprep.subr.bf16.mxu0 0
      %373 = vmatpush1.bf16.msra.mxu0 0
      %374 = vmatprep.subr.bf16.mxu0 0
      %375 = vmatpush1.bf16.msra.mxu0 0
      %376 = vmatprep.subr.bf16.mxu0 0
      %377 = vmatpush1.bf16.msra.mxu0 0
      %378 = vmatprep.subr.bf16.mxu0 0
      %379 = vmatpush1.bf16.msra.mxu0 %v351
      %380 = vmatprep.subr.bf16.mxu0 0
      %381 = vmatpush2.bf16.msra.mxu0 0
      %382 = vmatprep.subr.bf16.mxu0 0
      %383 = vmatpush2.bf16.msra.mxu0 0
      %384 = vmatprep.subr.bf16.mxu0 0
      %385 = vmatpush2.bf16.msra.mxu0 0
      %386 = vmatprep.subr.bf16.mxu0 0
      %387 = vmatpush2.bf16.msra.mxu0 0
      %388 = vmatprep.subr.bf16.mxu0 0
      %389 = vmatpush2.bf16.msra.mxu0 0
      %390 = vmatprep.subr.bf16.mxu0 0
      %391 = vmatpush2.bf16.msra.mxu0 0
      %392 = vmatprep.subr.bf16.mxu0 0
      %393 = vmatpush2.bf16.msra.mxu0 0
      %394 = vmatprep.subr.bf16.mxu0 0
      %395 = vmatpush2.bf16.msra.mxu0 0
      %396 = vmatprep.mubr.bf16.mxu0 0
      %397 = vmatmul.mubr.bf16.gmra.mxu0 %v353
      %v398 = vpop.f32.mrf.mxu0
      %v399 = vadd.f32 %v309, %v398
      %v400 = vpop.f32.mrf.mxu0
      %v401 = vpop.f32.mrf.mxu0
      %v402 = vadd.f32 %v312, %v401
      %v403 = vpop.f32.mrf.mxu0
      %404 = vmatprep.mubr.bf16.mxu0 0
      %405 = vmatmul.mubr.bf16.gmra.mxu0 %v355
      %v406 = vpop.f32.mrf.mxu0
      %v407 = vadd.f32 %v317, %v406
      %v408 = vpop.f32.mrf.mxu0
      %v409 = vpop.f32.mrf.mxu0
      %v410 = vadd.f32 %v320, %v409
      %v411 = vpop.f32.mrf.mxu0
      %412 = vmatprep.mubr.bf16.mxu0 0
      %413 = vmatmul.mubr.bf16.gmra.mxu0 %v357
      %v414 = vpop.f32.mrf.mxu0
      %v415 = vadd.f32 %v325, %v414
      %v416 = vpop.f32.mrf.mxu0
      %v417 = vpop.f32.mrf.mxu0
      %v418 = vadd.f32 %v328, %v417
      %v419 = vpop.f32.mrf.mxu0
      %420 = vmatprep.mubr.bf16.mxu0 0
      %421 = vmatmul.mubr.bf16.gmra.mxu0 %v359
      %v422 = vpop.f32.mrf.mxu0
      %v423 = vadd.f32 %v333, %v422
      %v424 = vpop.f32.mrf.mxu0
      %v425 = vpop.f32.mrf.mxu0
      %v426 = vadd.f32 %v336, %v425
      %v427 = vpop.f32.mrf.mxu0
      %428 = vmatprep.mubr.bf16.mxu0 0
      %429 = vmatmul.mubr.bf16.gmra.mxu0 %v362
      %v430 = vpop.f32.mrf.mxu0
      %v431 = vadd.f32 %v341, %v430
      %v432 = vpop.f32.mrf.mxu0
      %v433 = vpop.f32.mrf.mxu0
      %v434 = vpop.f32.mrf.mxu0
      %435 = vdwg.mxu0
      %v436 = vld [vmem:[%s165 + $0x4] sm:$0xf]
      %v437 = vld [vmem:[%s165 + $0x8] sm:$0xf]
      %v438 = vld [vmem:[%s165 + $0xc] sm:$0xf]
      %v439 = vld [vmem:[%s165 + $0x10] sm:$0xf]
      %v440 = vld [vmem:[%s165 + $0x14] sm:$0xf]
      %v441 = vld [vmem:[%s165 + $0x18] sm:$0xf]
      %v442 = vld [vmem:[%s165 + $0x1c] sm:$0xf]
      %v443 = vld [vmem:[%s165 + $0x20] sm:$0xf]
      %v444 = vld [vmem:[%s165 + $0x24] sm:$0xf]
      %v445 = vld [vmem:[%s165 + $0x28] sm:$0x1]
      %s446 = scalar_lea.vmem %s1, 16
      %v447 = vld [vmem:[%s446] sm:$0xf]
      %v448 = vld [vmem:[%s446 + $0x4] sm:$0xf]
      %v459 = vunpack.c.l.b16 %v436
      %v460 = vunpack.c.l.b16 %v437
      %v461 = vunpack.c.l.b16 %v438
      %v462 = vunpack.c.l.b16 %v439
      %v463 = vunpack.c.l.b16 %v440
      %v464 = vunpack.c.l.b16 %v441
      %v465 = vunpack.c.l.b16 %v442
      %v466 = vunpack.c.l.b16 %v443
      %v467 = vunpack.c.l.b16 %v444
      %v468 = vunpack.c.l.b16 %v445
      %v469 = vpack.c.b16 %v460, %v459
      %v470 = vpack.c.b16 %v462, %v461
      %v471 = vpack.c.b16 %v464, %v463
      %v472 = vpack.c.b16 %v466, %v465
      %v473 = vpack.c.b16 %v468, %v467
      %v475 = vshrl.u32 %v469, 16
      %v477 = vshll.u32 %v469, 16
      %v479 = vrot.slane %v477, 1
      %v480 = vor.u32 %v475, %v479
      %v482 = vshll.u32 %v470, 16
      %v484 = vrot.slane %v482, 1
      %v485 = vsel %vm212, %v480, %v484
      %v486 = vshrl.u32 %v470, 16
      %v488 = vor.u32 %v486, %v484
      %v490 = vshll.u32 %v471, 16
      %v492 = vrot.slane %v490, 1
      %v493 = vsel %vm212, %v488, %v492
      %v494 = vshrl.u32 %v471, 16
      %v496 = vor.u32 %v494, %v492
      %v498 = vshll.u32 %v472, 16
      %v500 = vrot.slane %v498, 1
      %v501 = vsel %vm212, %v496, %v500
      %v502 = vshrl.u32 %v472, 16
      %v504 = vor.u32 %v502, %v500
      %v506 = vshll.u32 %v473, 16
      %v508 = vrot.slane %v506, 1
      %v509 = vsel %vm212, %v504, %v508
      %v510 = vshrl.u32 %v473, 16
      %v512 = vor.u32 %v510, %v508
      %v515 = vunpack.c.l.b16 %v447
      %v516 = vunpack.c.l.b16 %v448
      %v517 = vpack.c.b16 %v516, %v515
      %v520 = vsel %vm258, %v485, 0
      %v523 = vsel %vm258, %v493, 0
      %v526 = vsel %vm258, %v501, 0
      %v529 = vsel %vm258, %v509, 0
      %v532 = vsel %vm258, %v512, 0
      %534 = vmatprep.subr.bf16.mxu0 0
      %535 = vmatpush1.bf16.msra.mxu0 0
      %536 = vmatprep.subr.bf16.mxu0 0
      %537 = vmatpush1.bf16.msra.mxu0 0
      %538 = vmatprep.subr.bf16.mxu0 0
      %539 = vmatpush1.bf16.msra.mxu0 0
      %540 = vmatprep.subr.bf16.mxu0 0
      %541 = vmatpush1.bf16.msra.mxu0 0
      %542 = vmatprep.subr.bf16.mxu0 0
      %543 = vmatpush1.bf16.msra.mxu0 0
      %544 = vmatprep.subr.bf16.mxu0 0
      %545 = vmatpush1.bf16.msra.mxu0 0
      %546 = vmatprep.subr.bf16.mxu0 0
      %547 = vmatpush1.bf16.msra.mxu0 0
      %548 = vmatprep.subr.bf16.mxu0 0
      %549 = vmatpush1.bf16.msra.mxu0 %v517
      %550 = vmatprep.subr.bf16.mxu0 0
      %551 = vmatpush2.bf16.msra.mxu0 0
      %552 = vmatprep.subr.bf16.mxu0 0
      %553 = vmatpush2.bf16.msra.mxu0 0
      %554 = vmatprep.subr.bf16.mxu0 0
      %555 = vmatpush2.bf16.msra.mxu0 0
      %556 = vmatprep.subr.bf16.mxu0 0
      %557 = vmatpush2.bf16.msra.mxu0 0
      %558 = vmatprep.subr.bf16.mxu0 0
      %559 = vmatpush2.bf16.msra.mxu0 0
      %560 = vmatprep.subr.bf16.mxu0 0
      %561 = vmatpush2.bf16.msra.mxu0 0
      %562 = vmatprep.subr.bf16.mxu0 0
      %563 = vmatpush2.bf16.msra.mxu0 0
      %564 = vmatprep.subr.bf16.mxu0 0
      %565 = vmatpush2.bf16.msra.mxu0 0
      %566 = vmatprep.mubr.bf16.mxu0 0
      %567 = vmatmul.mubr.bf16.gmra.mxu0 %v520
      %v568 = vpop.f32.mrf.mxu0
      %v569 = vadd.f32 0.0, %v568
      %v570 = vpop.f32.mrf.mxu0
      %v571 = vpop.f32.mrf.mxu0
      %v572 = vadd.f32 0.0, %v571
      %v573 = vpop.f32.mrf.mxu0
      %574 = vmatprep.mubr.bf16.mxu0 0
      %575 = vmatmul.mubr.bf16.gmra.mxu0 %v523
      %v576 = vpop.f32.mrf.mxu0
      %v577 = vadd.f32 0.0, %v576
      %v578 = vpop.f32.mrf.mxu0
      %v579 = vpop.f32.mrf.mxu0
      %v580 = vadd.f32 0.0, %v579
      %v581 = vpop.f32.mrf.mxu0
      %582 = vmatprep.mubr.bf16.mxu0 0
      %583 = vmatmul.mubr.bf16.gmra.mxu0 %v526
      %v584 = vpop.f32.mrf.mxu0
      %v585 = vadd.f32 0.0, %v584
      %v586 = vpop.f32.mrf.mxu0
      %v587 = vpop.f32.mrf.mxu0
      %v588 = vadd.f32 0.0, %v587
      %v589 = vpop.f32.mrf.mxu0
      %590 = vmatprep.mubr.bf16.mxu0 0
      %591 = vmatmul.mubr.bf16.gmra.mxu0 %v529
      %v592 = vpop.f32.mrf.mxu0
      %v593 = vadd.f32 0.0, %v592
      %v594 = vpop.f32.mrf.mxu0
      %v595 = vpop.f32.mrf.mxu0
      %v596 = vadd.f32 0.0, %v595
      %v597 = vpop.f32.mrf.mxu0
      %598 = vmatprep.mubr.bf16.mxu0 0
      %599 = vmatmul.mubr.bf16.gmra.mxu0 %v532
      %v600 = vpop.f32.mrf.mxu0
      %v601 = vadd.f32 0.0, %v600
      %v602 = vpop.f32.mrf.mxu0
      %v603 = vpop.f32.mrf.mxu0
      %v604 = vpop.f32.mrf.mxu0
      %605 = vdwg.mxu0
      %v606 = vadd.f32 %v399, %v569
      %v607 = vadd.f32 %v402, %v572
      %v608 = vadd.f32 %v407, %v577
      %v609 = vadd.f32 %v410, %v580
      %v610 = vadd.f32 %v415, %v585
      %v611 = vadd.f32 %v418, %v588
      %v612 = vadd.f32 %v423, %v593
      %v613 = vadd.f32 %v426, %v596
      %v614 = vadd.f32 %v431, %v601
      %v615 = vld [vmem:[%s165 + $0x4] sm:$0xe]
      %s616 = scalar_lea.vmem %s1, 24
      %v617 = vld [vmem:[%s616] sm:$0xf]
      %v618 = vld [vmem:[%s616 + $0x4] sm:$0xf]
      %v620 = vunpack.c.l.b16 %v615
      %v621 = vpack.c.b16 %v460, %v620
      %vm622 = vcmask 1046528
      %v623 = vrot.slane %v621, 1
      %v624 = vrot.slane %v470, 1
      %v625 = vsel %vm622, %v623, %v624
      %v626 = vrot.slane %v471, 1
      %v627 = vsel %vm622, %v624, %v626
      %v628 = vrot.slane %v472, 1
      %v629 = vsel %vm622, %v626, %v628
      %v630 = vrot.slane %v473, 1
      %v631 = vsel %vm622, %v628, %v630
      %v634 = vunpack.c.l.b16 %v617
      %v635 = vunpack.c.l.b16 %v618
      %v636 = vpack.c.b16 %v635, %v634
      %v639 = vsel %vm258, %v625, 0
      %v642 = vsel %vm258, %v627, 0
      %v645 = vsel %vm258, %v629, 0
      %v648 = vsel %vm258, %v631, 0
      %v651 = vsel %vm258, %v630, 0
      %653 = vmatprep.subr.bf16.mxu0 0
      %654 = vmatpush1.bf16.msra.mxu0 0
      %655 = vmatprep.subr.bf16.mxu0 0
      %656 = vmatpush1.bf16.msra.mxu0 0
      %657 = vmatprep.subr.bf16.mxu0 0
      %658 = vmatpush1.bf16.msra.mxu0 0
      %659 = vmatprep.subr.bf16.mxu0 0
      %660 = vmatpush1.bf16.msra.mxu0 0
      %661 = vmatprep.subr.bf16.mxu0 0
      %662 = vmatpush1.bf16.msra.mxu0 0
      %663 = vmatprep.subr.bf16.mxu0 0
      %664 = vmatpush1.bf16.msra.mxu0 0
      %665 = vmatprep.subr.bf16.mxu0 0
      %666 = vmatpush1.bf16.msra.mxu0 0
      %667 = vmatprep.subr.bf16.mxu0 0
      %668 = vmatpush1.bf16.msra.mxu0 %v636
      %669 = vmatprep.subr.bf16.mxu0 0
      %670 = vmatpush2.bf16.msra.mxu0 0
      %671 = vmatprep.subr.bf16.mxu0 0
      %672 = vmatpush2.bf16.msra.mxu0 0
      %673 = vmatprep.subr.bf16.mxu0 0
      %674 = vmatpush2.bf16.msra.mxu0 0
      %675 = vmatprep.subr.bf16.mxu0 0
      %676 = vmatpush2.bf16.msra.mxu0 0
      %677 = vmatprep.subr.bf16.mxu0 0
      %678 = vmatpush2.bf16.msra.mxu0 0
      %679 = vmatprep.subr.bf16.mxu0 0
      %680 = vmatpush2.bf16.msra.mxu0 0
      %681 = vmatprep.subr.bf16.mxu0 0
      %682 = vmatpush2.bf16.msra.mxu0 0
      %683 = vmatprep.subr.bf16.mxu0 0
      %684 = vmatpush2.bf16.msra.mxu0 0
      %685 = vmatprep.mubr.bf16.mxu0 0
      %686 = vmatmul.mubr.bf16.gmra.mxu0 %v639
      %v687 = vpop.f32.mrf.mxu0
      %v688 = vadd.f32 0.0, %v687
      %v689 = vpop.f32.mrf.mxu0
      %v690 = vpop.f32.mrf.mxu0
      %v691 = vadd.f32 0.0, %v690
      %v692 = vpop.f32.mrf.mxu0
      %693 = vmatprep.mubr.bf16.mxu0 0
      %694 = vmatmul.mubr.bf16.gmra.mxu0 %v642
      %v695 = vpop.f32.mrf.mxu0
      %v696 = vadd.f32 0.0, %v695
      %v697 = vpop.f32.mrf.mxu0
      %v698 = vpop.f32.mrf.mxu0
      %v699 = vadd.f32 0.0, %v698
      %v700 = vpop.f32.mrf.mxu0
      %701 = vmatprep.mubr.bf16.mxu0 0
      %702 = vmatmul.mubr.bf16.gmra.mxu0 %v645
      %v703 = vpop.f32.mrf.mxu0
      %v704 = vadd.f32 0.0, %v703
      %v705 = vpop.f32.mrf.mxu0
      %v706 = vpop.f32.mrf.mxu0
      %v707 = vadd.f32 0.0, %v706
      %v708 = vpop.f32.mrf.mxu0
      %709 = vmatprep.mubr.bf16.mxu0 0
      %710 = vmatmul.mubr.bf16.gmra.mxu0 %v648
      %v711 = vpop.f32.mrf.mxu0
      %v712 = vadd.f32 0.0, %v711
      %v713 = vpop.f32.mrf.mxu0
      %v714 = vpop.f32.mrf.mxu0
      %v715 = vadd.f32 0.0, %v714
      %v716 = vpop.f32.mrf.mxu0
      %717 = vmatprep.mubr.bf16.mxu0 0
      %718 = vmatmul.mubr.bf16.gmra.mxu0 %v651
      %v719 = vpop.f32.mrf.mxu0
      %v720 = vadd.f32 0.0, %v719
      %v721 = vpop.f32.mrf.mxu0
      %v722 = vpop.f32.mrf.mxu0
      %v723 = vpop.f32.mrf.mxu0
      %724 = vdwg.mxu0
      %v725 = vadd.f32 %v606, %v688
      %v726 = vadd.f32 %v607, %v691
      %v727 = vadd.f32 %v608, %v696
      %v728 = vadd.f32 %v609, %v699
      %v729 = vadd.f32 %v610, %v704
      %v730 = vadd.f32 %v611, %v707
      %v731 = vadd.f32 %v612, %v712
      %v732 = vadd.f32 %v613, %v715
      %v733 = vadd.f32 %v614, %v720
      %v734 = vld [vmem:[%s2] sm:$0x1]
      %v735 = vlaneseq
      %v736 = vshrl.u32 %v735, 7
      %v737 = vsub.s32 0, %v736
      %v738 = vrot.slane %v734, %v737
      %v739 = vmul.f32 %v725, %v738
      %v740 = vmul.f32 %v726, %v738
      %v741 = vmul.f32 %v727, %v738
      %v742 = vmul.f32 %v728, %v738
      %v743 = vmul.f32 %v729, %v738
      %v744 = vmul.f32 %v730, %v738
      %v745 = vmul.f32 %v731, %v738
      %v746 = vmul.f32 %v732, %v738
      %v747 = vmul.f32 %v733, %v738
      %v748 = vld [vmem:[%s2 + $0x1] sm:$0x1]
      %v749 = vlaneseq
      %v750 = vshrl.u32 %v749, 7
      %v751 = vsub.s32 0, %v750
      %v752 = vrot.slane %v748, %v751
      %v753 = vadd.f32 %v739, %v752
      %v754 = vadd.f32 %v740, %v752
      %v755 = vadd.f32 %v741, %v752
      %v756 = vadd.f32 %v742, %v752
      %v757 = vadd.f32 %v743, %v752
      %v758 = vadd.f32 %v744, %v752
      %v759 = vadd.f32 %v745, %v752
      %v760 = vadd.f32 %v746, %v752
      %v761 = vadd.f32 %v747, %v752
      %vm762 = vcmp.ge.f32.partialorder %v753, 0.0
      %vm763 = vcmp.ge.f32.partialorder %v754, 0.0
      %vm764 = vcmp.ge.f32.partialorder %v755, 0.0
      %vm765 = vcmp.ge.f32.partialorder %v756, 0.0
      %vm766 = vcmp.ge.f32.partialorder %v757, 0.0
      %vm767 = vcmp.ge.f32.partialorder %v758, 0.0
      %vm768 = vcmp.ge.f32.partialorder %v759, 0.0
      %vm769 = vcmp.ge.f32.partialorder %v760, 0.0
      %vm770 = vcmp.ge.f32.partialorder %v761, 0.0
      %v771 = vmul.f32 %v753, 0.01
      %v772 = vmul.f32 %v754, 0.01
      %v773 = vmul.f32 %v755, 0.01
      %v774 = vmul.f32 %v756, 0.01
      %v775 = vmul.f32 %v757, 0.01
      %v776 = vmul.f32 %v758, 0.01
      %v777 = vmul.f32 %v759, 0.01
      %v778 = vmul.f32 %v760, 0.01
      %v779 = vmul.f32 %v761, 0.01
      %v780 = vsel %vm762, %v753, %v771
      %v781 = vsel %vm763, %v754, %v772
      %v782 = vsel %vm764, %v755, %v773
      %v783 = vsel %vm765, %v756, %v774
      %v784 = vsel %vm766, %v757, %v775
      %v785 = vsel %vm767, %v758, %v776
      %v786 = vsel %vm768, %v759, %v777
      %v787 = vsel %vm769, %v760, %v778
      %v788 = vsel %vm770, %v761, %v779
      %789 = vst [vmem:[%s170] sm:$0xff] %v780
      %790 = vst [vmem:[%s170 + $0x8] sm:$0xff] %v781
      %791 = vst [vmem:[%s170 + $0x10] sm:$0xff] %v782
      %792 = vst [vmem:[%s170 + $0x18] sm:$0xff] %v783
      %793 = vst [vmem:[%s170 + $0x20] sm:$0xff] %v784
      %794 = vst [vmem:[%s170 + $0x28] sm:$0xff] %v785
      %795 = vst [vmem:[%s170 + $0x30] sm:$0xff] %v786
      %796 = vst [vmem:[%s170 + $0x38] sm:$0xff] %v787
      %797 = vst [vmem:[%s170 + $0x40] sm:$0xff] %v788
      %p798 = scmp.lt.s32.totalorder %s14, 1
      %s799 = scalar_select %p798, %s14, 1
      %s800 = smul.addr %s799, 9
      %s801 = smul.addr %s800, 8
      %s802 = scalar_lea.vmem %s3, %s801
      // Predicated region
      $region33: #{down_conv_forward.3} parent=31 // pred_check
        %p803 = pneg %p100
      $region34: #{down_conv_forward.3} parent=31 // pred_check_branch
        %805 = sbr.rel (%p803) target = $region36
      $region35: #{down_conv_forward.3} parent=31 // pred_region
        _
      $region36: #{down_conv_forward.3} parent=31 // pred_fallthru
        _
    $region32: #{down_conv_forward.3} parent=5 // pred_fallthru
      _
    %p806 = scmp.le.s32.totalorder 2, %s9
    // Predicated region
    $region37: #{down_conv_forward.3} parent=5 // pred_check
      %p807 = pneg %p806
    $region38: #{down_conv_forward.3} parent=5 // pred_check_branch
      %809 = sbr.rel (%p807) target = $region40
    $region39: #{down_conv_forward.3} parent=5 // pred_region
      %s810 = ssub.s32 %s9, 2
      // Predicated region
      $region41: #{down_conv_forward.3} parent=39 // pred_check
        %p811 = pneg %p106
      $region42: #{down_conv_forward.3} parent=39 // pred_check_branch
        %813 = sbr.rel (%p811) target = $region44
      $region43: #{down_conv_forward.3} parent=39 // pred_region
        %p814 = scmp.lt.s32.totalorder %s15, 1
        %s815 = scalar_select %p814, %s15, 1
        %s816 = smul.addr %s815, 9
        %s817 = smul.addr %s816, 8
        %s818 = scalar_lea.vmem %s3, %s817
      $region44: #{down_conv_forward.3} parent=39 // pred_fallthru
        _
    $region40: #{down_conv_forward.3} parent=5 // pred_fallthru
      _
  $region6: #{down_conv_forward.3} parent=0 // loop_footer
    %s13 = sadd.s32 1, %s9
  $region7: #{down_conv_forward.3} parent=0 // loop_footer_branch
    %8 = sbr.rel target = $region3
  $region8: #{down_conv_forward.3} parent=0 // loop_exit
    _

</llo_original>
